<compile_context>
chip_gen: v7x
topology: tpu7x:2x2x1
jax: 0.10.0
libtpu: 0.0.40
codegen_flags: <defaults>
</compile_context>

<pallas_src>
import numpy as np
import jax
import jax.numpy as jnp
from jax import lax
from jax.experimental import pallas as pl
from jax.experimental.pallas import tpu as pltpu

# ---- configuration (the `opt` analogue) ------------------------------------
BATCH = 8          # opt.batch_size
N_UNROLL = 4       # opt.n_unroll_blocks
FEAT = 16          # feature dim D; student.lin.weight is (1, FEAT)
HID = 32           # generator hidden width
N_DATA = 64        # dataset size -> nb_batch = N_DATA // BATCH
LR = 1e-3          # inner-loop step size (0.001 in the reference)


# ---------------------------------------------------------------------------
# Pallas kernel: ONE invocation, whole unroll inside.
# ---------------------------------------------------------------------------
def _unrolled_kernel(idx_ref,                         # SMEM (N_UNROLL, 3) int32
                     x_ref,                           # VMEM (N_DATA, FEAT)
                     y_ref,                           # VMEM (N_DATA, 1)
                     w_init_ref,                      # VMEM (1, FEAT)
                     w1x_ref,                         # VMEM (2*FEAT, HID)  = [W1x1; W1x2]
                     w1w_ref,                         # VMEM (FEAT, HID)
                     w1wt_ref,                        # VMEM (HID, FEAT)    = W1w.T
                     w1y1_ref, w1y2_ref, b1_ref,      # VMEM (1, HID)
                     w2t_ref,                         # VMEM (1, HID)       = W2.T
                     b2_ref,                          # SMEM (1,) f32
                     w_out_ref,                       # VMEM (1, FEAT)
                     loss_stu_ref,                    # SMEM (1,)
                     sl_ref):                         # SMEM (N_UNROLL,)
    # ---- hoisted, carry-independent phase (off the sequential chain) -------
    x1s, x2s, xqs, y1s, y2s, yqs, x12s = [], [], [], [], [], [], []
    for t in range(N_UNROLL):
        def grab(k):
            start = pl.multiple_of(idx_ref[t, k] * BATCH, BATCH)
            return (x_ref[pl.ds(start, BATCH), :], y_ref[pl.ds(start, BATCH), :])
        x1, y1 = grab(0)
        x2, y2 = grab(1)
        xq, yq = grab(2)
        x1s.append(x1); x2s.append(x2); xqs.append(xq)
        y1s.append(y1); y2s.append(y2); yqs.append(yq)
        x12s.append(jnp.concatenate([x1, x2], axis=-1))      # (BATCH, 2*FEAT)

    # one fused matmul for all unroll steps:
    #   x1@W1x1 + x2@W1x2  ==  [x1|x2] @ [W1x1; W1x2]
    x12_all = jnp.concatenate(x12s, axis=0)                  # (N_UNROLL*BATCH, 2*FEAT)
    zb_all = jnp.dot(x12_all, w1x_ref[...],
                     preferred_element_type=jnp.float32)     # (N_UNROLL*BATCH, HID)

    w1y1 = w1y1_ref[...]
    w1y2 = w1y2_ref[...]
    b1 = b1_ref[...]
    w2t = w2t_ref[...]
    b2 = b2_ref[0]
    w1w = w1w_ref[...]
    w1wt = w1wt_ref[...]
    zbases = [zb_all[t * BATCH:(t + 1) * BATCH, :]
              + y1s[t] * w1y1 + y2s[t] * w1y2 + b1
              for t in range(N_UNROLL)]

    # ---- sequential carried phase (student-weight carry) --------------------
    w = w_init_ref[...]                                      # (1, FEAT)
    loss_stu = jnp.float32(0.0)
    for t in range(N_UNROLL):
        # generator(cat((w_t, x1, x2), dim=1), y1, y2)
        zw = jnp.dot(w, w1w, preferred_element_type=jnp.float32)   # (1, HID)
        z = zbases[t] + zw                                   # (BATCH, HID)
        h = jnp.maximum(z, 0.0)
        # h@W2 + b2 averaged over the batch, done on the VPU (no 1-col MXU push):
        s = jnp.sum(h * w2t)
        alpha = jax.nn.sigmoid(s / BATCH + b2)               # scalar mixing coeff

        # mixup_data (lam = alpha); mixed_y is computed but unused in the ref.
        mixed_x = alpha * x1s[t] + (1.0 - alpha) * x2s[t]
        out = jnp.sum(mixed_x * w, axis=-1, keepdims=True)   # student forward (B,1)

        # mixup_criterion with nn.MSELoss()
        loss_a = jnp.sum((out - y1s[t]) ** 2) / BATCH
        loss_b = jnp.sum((out - y2s[t]) ** 2) / BATCH
        loss = alpha * loss_a + (1.0 - alpha) * loss_b
        sl_ref[t] = loss                                     # student_loss.append(...)

        # --- d loss / d w_t == torch.autograd.grad(loss, student.lin.weight) ---
        # path 1: through the student forward (out = mixed_x @ w^T)
        d_out = (2.0 / BATCH) * (alpha * (out - y1s[t])
                                 + (1.0 - alpha) * (out - y2s[t]))   # (B,1)
        grad_direct = jnp.sum(d_out * mixed_x, axis=0, keepdims=True)  # (1, FEAT)

        # path 2: through alpha = sigmoid(mean_b(relu(zbase + w@W1w) @ W2) + b2)
        cnt = jnp.sum((h > 0.0).astype(jnp.float32),
                      axis=0, keepdims=True)                 # (1, HID) relu' counts
        ds_dw = jnp.dot(cnt * w2t, w1wt,
                        preferred_element_type=jnp.float32)  # (1, FEAT)
        dalpha_dw = (alpha * (1.0 - alpha) / BATCH) * ds_dw  # (1, FEAT)
        dxw = jnp.sum((x1s[t] - x2s[t]) * w, axis=-1, keepdims=True)   # (B,1)
        c_alpha = jnp.sum(d_out * dxw) + (loss_a - loss_b)   # dL/dalpha (total)

        grad_w = grad_direct + c_alpha * dalpha_dw
        w = w - LR * grad_w

        # tau: `if i != -1` is always true in the reference -> tau == 1
        out_stu = jnp.sum(xqs[t] * w, axis=-1, keepdims=True)      # new_w @ gt_x^T
        loss_stu = loss_stu + jnp.sum((out_stu - yqs[t]) ** 2) / BATCH

    w_out_ref[...] = w
    loss_stu_ref[0] = loss_stu


def _forward_pallas(idx, X, Y2, w_init, w1x, w1w, w1wt, w1y1, w1y2, b1, w2t, b2):
    def vmem():
        return pl.BlockSpec(memory_space=pltpu.MemorySpace.VMEM)

    def smem():
        return pl.BlockSpec(memory_space=pltpu.MemorySpace.SMEM)

    return pl.pallas_call(
        _unrolled_kernel,
        in_specs=[smem(),                       # idx
                  vmem(), vmem(),               # X, Y2
                  vmem(),                       # w_init
                  vmem(), vmem(), vmem(),       # [W1x1;W1x2], W1w, W1w^T
                  vmem(), vmem(), vmem(),       # w1y1, w1y2, b1
                  vmem(),                       # W2^T
                  smem()],                      # b2 scalar
        out_specs=(vmem(), smem(), smem()),
        out_shape=(
            jax.ShapeDtypeStruct((1, FEAT), jnp.float32),     # final new_weight
            jax.ShapeDtypeStruct((1,), jnp.float32),          # loss_stu
            jax.ShapeDtypeStruct((N_UNROLL,), jnp.float32),   # student_loss per step
        ),
    )(idx, X, Y2, w_init, w1x, w1w, w1wt, w1y1, w1y2, b1, w2t, b2)


# ---------------------------------------------------------------------------
# Pure-JAX mirror (used for grad_stu and as a numerical reference).
# Fully traced: idx is sliced with lax.dynamic_slice -> no per-idx recompiles.
# The per-step inner gradient is taken with jax.value_and_grad, which matches
# torch.autograd.grad(loss, student.lin.weight, create_graph=True) exactly and
# stays differentiable w.r.t. the generator params for the outer grad.
# ---------------------------------------------------------------------------
def _generator_alpha(p, w_t, x1, x2, y1, y2):
    z = (x1 @ p["W1x1"] + x2 @ p["W1x2"] + w_t @ p["W1w"]
         + y1 * p["w1y1"] + y2 * p["w1y2"] + p["b1"])
    h = jnp.maximum(z, 0.0)
    a = h @ p["W2"] + p["b2"]
    return jax.nn.sigmoid(jnp.sum(a) / BATCH)


def _unrolled_ref(p, w_init, X, Y2, idx):
    w = w_init
    loss_stu = jnp.float32(0.0)
    student_loss = []
    for t in range(N_UNROLL):
        def grab(k):
            start = idx[t, k] * BATCH
            return (lax.dynamic_slice_in_dim(X, start, BATCH, axis=0),
                    lax.dynamic_slice_in_dim(Y2, start, BATCH, axis=0))
        x1, y1 = grab(0)
        x2, y2 = grab(1)
        xq, yq = grab(2)

        # In torch, self.student.lin.weight is re-wrapped in nn.Parameter each
        # step, so the generator input and the student forward see a detached
        # copy of the carried weight; replicate that with stop_gradient (the
        # carried update chain through grad_w stays differentiable, matching
        # create_graph=True on torch.autograd.grad).
        w_det = lax.stop_gradient(w)

        def step_loss(w_var):
            alpha = _generator_alpha(p, w_var, x1, x2, y1, y2)
            mixed_x = alpha * x1 + (1.0 - alpha) * x2
            out = jnp.sum(mixed_x * w_var, axis=-1, keepdims=True)
            return (alpha * jnp.mean((out - y1) ** 2)
                    + (1.0 - alpha) * jnp.mean((out - y2) ** 2))

        loss, grad_w = jax.value_and_grad(step_loss)(w_det)
        w = w - LR * grad_w                                   # differentiable chain
        out_stu = jnp.sum(xq * w, axis=-1, keepdims=True)
        loss_stu = loss_stu + jnp.mean((out_stu - yq) ** 2)   # tau == 1
        student_loss.append(loss)
    return loss_stu, (w, jnp.stack(student_loss))


# ---------------------------------------------------------------------------
# Wrapper: mirrors UnrolledBlackBoxOptimizer.forward(weight, w_star, w_init).
# Returns (grad_stu, loss_stu, student_loss, new_weight).
# ---------------------------------------------------------------------------
@jax.jit
def unrolled_blackbox_optimizer(gen_params, w_star, w_init, X, Y, idx):
    # TODO(synk): the reference's `for param in ...: param = w_init/w_star`
    # loops are no-ops in torch; teacher weights never affect the outputs, and
    # the student is taken to start at w_init (the only sensible reading).
    del w_star
    Y2 = Y.reshape(-1, 1).astype(jnp.float32)

    # layout prep (cheap, jitted once): fuse [W1x1; W1x2], precompute W1w^T,
    # transpose W2, scalarize b2.
    w1x = jnp.concatenate([gen_params["W1x1"], gen_params["W1x2"]], axis=0)
    w1wt = gen_params["W1w"].T
    w2t = gen_params["W2"].reshape(1, HID)
    b2 = gen_params["b2"].reshape(1)

    new_w, loss_stu, student_loss = _forward_pallas(
        idx, X, Y2, w_init, w1x, gen_params["W1w"], w1wt,
        gen_params["w1y1"], gen_params["w1y2"], gen_params["b1"], w2t, b2)

    # TODO(synk): Pallas has no AD; grad_stu (= torch.autograd.grad w.r.t. the
    # generator parameters) is taken with jax.grad over the pure-JAX mirror of
    # the identical math, inside the same jit (traced idx, no host sync).
    grad_stu = jax.grad(lambda p: _unrolled_ref(p, w_init, X, Y2, idx)[0])(gen_params)

    return grad_stu, loss_stu[0], student_loss, new_w


# ---------------------------------------------------------------------------
if __name__ == "__main__":
    key = jax.random.PRNGKey(0)
    ks = jax.random.split(key, 12)

    X = jax.random.normal(ks[0], (N_DATA, FEAT), jnp.float32)
    Y = jax.random.normal(ks[1], (N_DATA,), jnp.float32)
    w_init = 0.1 * jax.random.normal(ks[2], (1, FEAT), jnp.float32)
    w_star = 0.1 * jax.random.normal(ks[3], (1, FEAT), jnp.float32)   # parity only

    gen_params = {
        "W1w":  0.1 * jax.random.normal(ks[4], (FEAT, HID), jnp.float32),
        "W1x1": 0.1 * jax.random.normal(ks[5], (FEAT, HID), jnp.float32),
        "W1x2": 0.1 * jax.random.normal(ks[6], (FEAT, HID), jnp.float32),
        "w1y1": 0.1 * jax.random.normal(ks[7], (1, HID), jnp.float32),
        "w1y2": 0.1 * jax.random.normal(ks[8], (1, HID), jnp.float32),
        "b1":   jnp.zeros((1, HID), jnp.float32),
        "W2":   0.1 * jax.random.normal(ks[9], (HID, 1), jnp.float32),
        "b2":   jnp.zeros((1, 1), jnp.float32),
    }

    nb_batch = N_DATA // BATCH
    # deterministic stand-in for the torch.randint mini-batch picks
    idx = jax.random.randint(ks[10], (N_UNROLL, 3), 0, nb_batch, dtype=jnp.int32)

    grad_stu, loss_stu, student_loss, new_w = unrolled_blackbox_optimizer(
        gen_params, w_star, w_init, X, Y, idx)
    jax.block_until_ready((grad_stu, loss_stu, student_loss, new_w))

    # sanity check: Pallas kernel vs pure-JAX autodiff mirror (also validates
    # the kernel's analytic inner gradient, alpha-path included)
    ref_loss, (ref_w, ref_sl) = _unrolled_ref(
        gen_params, w_init, X, Y.reshape(-1, 1).astype(jnp.float32), idx)
    assert np.allclose(np.asarray(loss_stu), np.asarray(ref_loss), rtol=1e-2, atol=1e-2)
    assert np.allclose(np.asarray(student_loss), np.asarray(ref_sl), rtol=1e-2, atol=1e-2)
    assert np.allclose(np.asarray(new_w), np.asarray(ref_w), rtol=1e-2, atol=1e-2)

    print("KERNEL_OK")
</pallas_src>

<mosaic_0001>
module attributes {stable_mosaic.version = 11 : i64} {
  func.func @_unrolled_kernel(%arg0: memref<4x3xi32, #tpu.memory_space<smem>>, %arg1: memref<64x16xf32, #tpu.memory_space<vmem>>, %arg2: memref<64x1xf32, #tpu.memory_space<vmem>>, %arg3: memref<1x16xf32, #tpu.memory_space<vmem>>, %arg4: memref<32x32xf32, #tpu.memory_space<vmem>>, %arg5: memref<16x32xf32, #tpu.memory_space<vmem>>, %arg6: memref<32x16xf32, #tpu.memory_space<vmem>>, %arg7: memref<1x32xf32, #tpu.memory_space<vmem>>, %arg8: memref<1x32xf32, #tpu.memory_space<vmem>>, %arg9: memref<1x32xf32, #tpu.memory_space<vmem>>, %arg10: memref<1x32xf32, #tpu.memory_space<vmem>>, %arg11: memref<1xf32, #tpu.memory_space<smem>>, %arg12: memref<1x16xf32, #tpu.memory_space<vmem>>, %arg13: memref<1xf32, #tpu.memory_space<smem>>, %arg14: memref<4xf32, #tpu.memory_space<smem>>) attributes {dimension_semantics = [], scalar_prefetch = 0 : i64, scratch_operands = 0 : i64, tpu.core_type = #tpu.core_type<tc>} {
    %c0 = arith.constant 0 : index
    %c0_0 = arith.constant 0 : index
    %0 = memref.load %arg0[%c0, %c0_0] : memref<4x3xi32, #tpu.memory_space<smem>>
    %c8_i32 = arith.constant 8 : i32
    %1 = arith.muli %0, %c8_i32 : i32
    %2 = tpu.assume_multiple %1, 8 : i32
    %3 = arith.index_cast %2 : i32 to index
    %c0_1 = arith.constant 0 : index
    %4 = vector.load %arg1[%3, %c0_1] : memref<64x16xf32, #tpu.memory_space<vmem>>, vector<8x16xf32>
    %5 = arith.index_cast %2 : i32 to index
    %c0_2 = arith.constant 0 : index
    %6 = vector.load %arg2[%5, %c0_2] : memref<64x1xf32, #tpu.memory_space<vmem>>, vector<8x1xf32>
    %c0_3 = arith.constant 0 : index
    %c1 = arith.constant 1 : index
    %7 = memref.load %arg0[%c0_3, %c1] : memref<4x3xi32, #tpu.memory_space<smem>>
    %c8_i32_4 = arith.constant 8 : i32
    %8 = arith.muli %7, %c8_i32_4 : i32
    %9 = tpu.assume_multiple %8, 8 : i32
    %10 = arith.index_cast %9 : i32 to index
    %c0_5 = arith.constant 0 : index
    %11 = vector.load %arg1[%10, %c0_5] : memref<64x16xf32, #tpu.memory_space<vmem>>, vector<8x16xf32>
    %12 = arith.index_cast %9 : i32 to index
    %c0_6 = arith.constant 0 : index
    %13 = vector.load %arg2[%12, %c0_6] : memref<64x1xf32, #tpu.memory_space<vmem>>, vector<8x1xf32>
    %c0_7 = arith.constant 0 : index
    %c2 = arith.constant 2 : index
    %14 = memref.load %arg0[%c0_7, %c2] : memref<4x3xi32, #tpu.memory_space<smem>>
    %c8_i32_8 = arith.constant 8 : i32
    %15 = arith.muli %14, %c8_i32_8 : i32
    %16 = tpu.assume_multiple %15, 8 : i32
    %17 = arith.index_cast %16 : i32 to index
    %c0_9 = arith.constant 0 : index
    %18 = vector.load %arg1[%17, %c0_9] : memref<64x16xf32, #tpu.memory_space<vmem>>, vector<8x16xf32>
    %19 = arith.index_cast %16 : i32 to index
    %c0_10 = arith.constant 0 : index
    %20 = vector.load %arg2[%19, %c0_10] : memref<64x1xf32, #tpu.memory_space<vmem>>, vector<8x1xf32>
    %21 = tpu.concatenate %4, %11 in 1 : vector<8x16xf32>, vector<8x16xf32> -> vector<8x32xf32>
    %c1_11 = arith.constant 1 : index
    %c0_12 = arith.constant 0 : index
    %22 = memref.load %arg0[%c1_11, %c0_12] : memref<4x3xi32, #tpu.memory_space<smem>>
    %c8_i32_13 = arith.constant 8 : i32
    %23 = arith.muli %22, %c8_i32_13 : i32
    %24 = tpu.assume_multiple %23, 8 : i32
    %25 = arith.index_cast %24 : i32 to index
    %c0_14 = arith.constant 0 : index
    %26 = vector.load %arg1[%25, %c0_14] : memref<64x16xf32, #tpu.memory_space<vmem>>, vector<8x16xf32>
    %27 = arith.index_cast %24 : i32 to index
    %c0_15 = arith.constant 0 : index
    %28 = vector.load %arg2[%27, %c0_15] : memref<64x1xf32, #tpu.memory_space<vmem>>, vector<8x1xf32>
    %c1_16 = arith.constant 1 : index
    %c1_17 = arith.constant 1 : index
    %29 = memref.load %arg0[%c1_16, %c1_17] : memref<4x3xi32, #tpu.memory_space<smem>>
    %c8_i32_18 = arith.constant 8 : i32
    %30 = arith.muli %29, %c8_i32_18 : i32
    %31 = tpu.assume_multiple %30, 8 : i32
    %32 = arith.index_cast %31 : i32 to index
    %c0_19 = arith.constant 0 : index
    %33 = vector.load %arg1[%32, %c0_19] : memref<64x16xf32, #tpu.memory_space<vmem>>, vector<8x16xf32>
    %34 = arith.index_cast %31 : i32 to index
    %c0_20 = arith.constant 0 : index
    %35 = vector.load %arg2[%34, %c0_20] : memref<64x1xf32, #tpu.memory_space<vmem>>, vector<8x1xf32>
    %c1_21 = arith.constant 1 : index
    %c2_22 = arith.constant 2 : index
    %36 = memref.load %arg0[%c1_21, %c2_22] : memref<4x3xi32, #tpu.memory_space<smem>>
    %c8_i32_23 = arith.constant 8 : i32
    %37 = arith.muli %36, %c8_i32_23 : i32
    %38 = tpu.assume_multiple %37, 8 : i32
    %39 = arith.index_cast %38 : i32 to index
    %c0_24 = arith.constant 0 : index
    %40 = vector.load %arg1[%39, %c0_24] : memref<64x16xf32, #tpu.memory_space<vmem>>, vector<8x16xf32>
    %41 = arith.index_cast %38 : i32 to index
    %c0_25 = arith.constant 0 : index
    %42 = vector.load %arg2[%41, %c0_25] : memref<64x1xf32, #tpu.memory_space<vmem>>, vector<8x1xf32>
    %43 = tpu.concatenate %26, %33 in 1 : vector<8x16xf32>, vector<8x16xf32> -> vector<8x32xf32>
    %c2_26 = arith.constant 2 : index
    %c0_27 = arith.constant 0 : index
    %44 = memref.load %arg0[%c2_26, %c0_27] : memref<4x3xi32, #tpu.memory_space<smem>>
    %c8_i32_28 = arith.constant 8 : i32
    %45 = arith.muli %44, %c8_i32_28 : i32
    %46 = tpu.assume_multiple %45, 8 : i32
    %47 = arith.index_cast %46 : i32 to index
    %c0_29 = arith.constant 0 : index
    %48 = vector.load %arg1[%47, %c0_29] : memref<64x16xf32, #tpu.memory_space<vmem>>, vector<8x16xf32>
    %49 = arith.index_cast %46 : i32 to index
    %c0_30 = arith.constant 0 : index
    %50 = vector.load %arg2[%49, %c0_30] : memref<64x1xf32, #tpu.memory_space<vmem>>, vector<8x1xf32>
    %c2_31 = arith.constant 2 : index
    %c1_32 = arith.constant 1 : index
    %51 = memref.load %arg0[%c2_31, %c1_32] : memref<4x3xi32, #tpu.memory_space<smem>>
    %c8_i32_33 = arith.constant 8 : i32
    %52 = arith.muli %51, %c8_i32_33 : i32
    %53 = tpu.assume_multiple %52, 8 : i32
    %54 = arith.index_cast %53 : i32 to index
    %c0_34 = arith.constant 0 : index
    %55 = vector.load %arg1[%54, %c0_34] : memref<64x16xf32, #tpu.memory_space<vmem>>, vector<8x16xf32>
    %56 = arith.index_cast %53 : i32 to index
    %c0_35 = arith.constant 0 : index
    %57 = vector.load %arg2[%56, %c0_35] : memref<64x1xf32, #tpu.memory_space<vmem>>, vector<8x1xf32>
    %c2_36 = arith.constant 2 : index
    %c2_37 = arith.constant 2 : index
    %58 = memref.load %arg0[%c2_36, %c2_37] : memref<4x3xi32, #tpu.memory_space<smem>>
    %c8_i32_38 = arith.constant 8 : i32
    %59 = arith.muli %58, %c8_i32_38 : i32
    %60 = tpu.assume_multiple %59, 8 : i32
    %61 = arith.index_cast %60 : i32 to index
    %c0_39 = arith.constant 0 : index
    %62 = vector.load %arg1[%61, %c0_39] : memref<64x16xf32, #tpu.memory_space<vmem>>, vector<8x16xf32>
    %63 = arith.index_cast %60 : i32 to index
    %c0_40 = arith.constant 0 : index
    %64 = vector.load %arg2[%63, %c0_40] : memref<64x1xf32, #tpu.memory_space<vmem>>, vector<8x1xf32>
    %65 = tpu.concatenate %48, %55 in 1 : vector<8x16xf32>, vector<8x16xf32> -> vector<8x32xf32>
    %c3 = arith.constant 3 : index
    %c0_41 = arith.constant 0 : index
    %66 = memref.load %arg0[%c3, %c0_41] : memref<4x3xi32, #tpu.memory_space<smem>>
    %c8_i32_42 = arith.constant 8 : i32
    %67 = arith.muli %66, %c8_i32_42 : i32
    %68 = tpu.assume_multiple %67, 8 : i32
    %69 = arith.index_cast %68 : i32 to index
    %c0_43 = arith.constant 0 : index
    %70 = vector.load %arg1[%69, %c0_43] : memref<64x16xf32, #tpu.memory_space<vmem>>, vector<8x16xf32>
    %71 = arith.index_cast %68 : i32 to index
    %c0_44 = arith.constant 0 : index
    %72 = vector.load %arg2[%71, %c0_44] : memref<64x1xf32, #tpu.memory_space<vmem>>, vector<8x1xf32>
    %c3_45 = arith.constant 3 : index
    %c1_46 = arith.constant 1 : index
    %73 = memref.load %arg0[%c3_45, %c1_46] : memref<4x3xi32, #tpu.memory_space<smem>>
    %c8_i32_47 = arith.constant 8 : i32
    %74 = arith.muli %73, %c8_i32_47 : i32
    %75 = tpu.assume_multiple %74, 8 : i32
    %76 = arith.index_cast %75 : i32 to index
    %c0_48 = arith.constant 0 : index
    %77 = vector.load %arg1[%76, %c0_48] : memref<64x16xf32, #tpu.memory_space<vmem>>, vector<8x16xf32>
    %78 = arith.index_cast %75 : i32 to index
    %c0_49 = arith.constant 0 : index
    %79 = vector.load %arg2[%78, %c0_49] : memref<64x1xf32, #tpu.memory_space<vmem>>, vector<8x1xf32>
    %c3_50 = arith.constant 3 : index
    %c2_51 = arith.constant 2 : index
    %80 = memref.load %arg0[%c3_50, %c2_51] : memref<4x3xi32, #tpu.memory_space<smem>>
    %c8_i32_52 = arith.constant 8 : i32
    %81 = arith.muli %80, %c8_i32_52 : i32
    %82 = tpu.assume_multiple %81, 8 : i32
    %83 = arith.index_cast %82 : i32 to index
    %c0_53 = arith.constant 0 : index
    %84 = vector.load %arg1[%83, %c0_53] : memref<64x16xf32, #tpu.memory_space<vmem>>, vector<8x16xf32>
    %85 = arith.index_cast %82 : i32 to index
    %c0_54 = arith.constant 0 : index
    %86 = vector.load %arg2[%85, %c0_54] : memref<64x1xf32, #tpu.memory_space<vmem>>, vector<8x1xf32>
    %87 = tpu.concatenate %70, %77 in 1 : vector<8x16xf32>, vector<8x16xf32> -> vector<8x32xf32>
    %88 = tpu.concatenate %21, %43, %65, %87 in 0 : vector<8x32xf32>, vector<8x32xf32>, vector<8x32xf32>, vector<8x32xf32> -> vector<32x32xf32>
    %c0_55 = arith.constant 0 : index
    %c0_56 = arith.constant 0 : index
    %89 = vector.load %arg4[%c0_55, %c0_56] : memref<32x32xf32, #tpu.memory_space<vmem>>, vector<32x32xf32>
    %cst = arith.constant dense<0.000000e+00> : vector<32x32xf32>
    %90 = tpu.matmul %88, %89, %cst {dimension_numbers = #tpu.dot_dimension_numbers<[1], [0], [0], [1], [0, 0, 1, 1], [], []>} : vector<32x32xf32>, vector<32x32xf32>, vector<32x32xf32> -> vector<32x32xf32>
    %c0_57 = arith.constant 0 : index
    %c0_58 = arith.constant 0 : index
    %91 = vector.load %arg7[%c0_57, %c0_58] : memref<1x32xf32, #tpu.memory_space<vmem>>, vector<1x32xf32>
    %c0_59 = arith.constant 0 : index
    %c0_60 = arith.constant 0 : index
    %92 = vector.load %arg8[%c0_59, %c0_60] : memref<1x32xf32, #tpu.memory_space<vmem>>, vector<1x32xf32>
    %c0_61 = arith.constant 0 : index
    %c0_62 = arith.constant 0 : index
    %93 = vector.load %arg9[%c0_61, %c0_62] : memref<1x32xf32, #tpu.memory_space<vmem>>, vector<1x32xf32>
    %c0_63 = arith.constant 0 : index
    %c0_64 = arith.constant 0 : index
    %94 = vector.load %arg10[%c0_63, %c0_64] : memref<1x32xf32, #tpu.memory_space<vmem>>, vector<1x32xf32>
    %c0_65 = arith.constant 0 : index
    %95 = memref.load %arg11[%c0_65] : memref<1xf32, #tpu.memory_space<smem>>
    %c0_66 = arith.constant 0 : index
    %c0_67 = arith.constant 0 : index
    %96 = vector.load %arg5[%c0_66, %c0_67] : memref<16x32xf32, #tpu.memory_space<vmem>>, vector<16x32xf32>
    %c0_68 = arith.constant 0 : index
    %c0_69 = arith.constant 0 : index
    %97 = vector.load %arg6[%c0_68, %c0_69] : memref<32x16xf32, #tpu.memory_space<vmem>>, vector<32x16xf32>
    %98 = vector.extract_strided_slice %90 {offsets = [0, 0], sizes = [8, 32], strides = [1, 1]} : vector<32x32xf32> to vector<8x32xf32>
    %99 = vector.broadcast %6 : vector<8x1xf32> to vector<8x32xf32>
    %100 = vector.broadcast %91 : vector<1x32xf32> to vector<8x32xf32>
    %101 = arith.mulf %99, %100 : vector<8x32xf32>
    %102 = arith.addf %98, %101 : vector<8x32xf32>
    %103 = vector.broadcast %13 : vector<8x1xf32> to vector<8x32xf32>
    %104 = vector.broadcast %92 : vector<1x32xf32> to vector<8x32xf32>
    %105 = arith.mulf %103, %104 : vector<8x32xf32>
    %106 = arith.addf %102, %105 : vector<8x32xf32>
    %107 = vector.broadcast %93 : vector<1x32xf32> to vector<8x32xf32>
    %108 = arith.addf %106, %107 : vector<8x32xf32>
    %109 = vector.extract_strided_slice %90 {offsets = [8, 0], sizes = [8, 32], strides = [1, 1]} : vector<32x32xf32> to vector<8x32xf32>
    %110 = vector.broadcast %28 : vector<8x1xf32> to vector<8x32xf32>
    %111 = vector.broadcast %91 : vector<1x32xf32> to vector<8x32xf32>
    %112 = arith.mulf %110, %111 : vector<8x32xf32>
    %113 = arith.addf %109, %112 : vector<8x32xf32>
    %114 = vector.broadcast %35 : vector<8x1xf32> to vector<8x32xf32>
    %115 = vector.broadcast %92 : vector<1x32xf32> to vector<8x32xf32>
    %116 = arith.mulf %114, %115 : vector<8x32xf32>
    %117 = arith.addf %113, %116 : vector<8x32xf32>
    %118 = vector.broadcast %93 : vector<1x32xf32> to vector<8x32xf32>
    %119 = arith.addf %117, %118 : vector<8x32xf32>
    %120 = vector.extract_strided_slice %90 {offsets = [16, 0], sizes = [8, 32], strides = [1, 1]} : vector<32x32xf32> to vector<8x32xf32>
    %121 = vector.broadcast %50 : vector<8x1xf32> to vector<8x32xf32>
    %122 = vector.broadcast %91 : vector<1x32xf32> to vector<8x32xf32>
    %123 = arith.mulf %121, %122 : vector<8x32xf32>
    %124 = arith.addf %120, %123 : vector<8x32xf32>
    %125 = vector.broadcast %57 : vector<8x1xf32> to vector<8x32xf32>
    %126 = vector.broadcast %92 : vector<1x32xf32> to vector<8x32xf32>
    %127 = arith.mulf %125, %126 : vector<8x32xf32>
    %128 = arith.addf %124, %127 : vector<8x32xf32>
    %129 = vector.broadcast %93 : vector<1x32xf32> to vector<8x32xf32>
    %130 = arith.addf %128, %129 : vector<8x32xf32>
    %131 = vector.extract_strided_slice %90 {offsets = [24, 0], sizes = [8, 32], strides = [1, 1]} : vector<32x32xf32> to vector<8x32xf32>
    %132 = vector.broadcast %72 : vector<8x1xf32> to vector<8x32xf32>
    %133 = vector.broadcast %91 : vector<1x32xf32> to vector<8x32xf32>
    %134 = arith.mulf %132, %133 : vector<8x32xf32>
    %135 = arith.addf %131, %134 : vector<8x32xf32>
    %136 = vector.broadcast %79 : vector<8x1xf32> to vector<8x32xf32>
    %137 = vector.broadcast %92 : vector<1x32xf32> to vector<8x32xf32>
    %138 = arith.mulf %136, %137 : vector<8x32xf32>
    %139 = arith.addf %135, %138 : vector<8x32xf32>
    %140 = vector.broadcast %93 : vector<1x32xf32> to vector<8x32xf32>
    %141 = arith.addf %139, %140 : vector<8x32xf32>
    %c0_70 = arith.constant 0 : index
    %c0_71 = arith.constant 0 : index
    %142 = vector.load %arg3[%c0_70, %c0_71] : memref<1x16xf32, #tpu.memory_space<vmem>>, vector<1x16xf32>
    %cst_72 = arith.constant dense<0.000000e+00> : vector<1x32xf32>
    %143 = tpu.matmul %142, %96, %cst_72 {dimension_numbers = #tpu.dot_dimension_numbers<[1], [0], [0], [1], [0, 0, 1, 1], [], []>} : vector<1x16xf32>, vector<16x32xf32>, vector<1x32xf32> -> vector<1x32xf32>
    %144 = vector.broadcast %143 : vector<1x32xf32> to vector<8x32xf32>
    %145 = arith.addf %108, %144 : vector<8x32xf32>
    %cst_73 = arith.constant 0.000000e+00 : f32
    %146 = vector.broadcast %cst_73 : f32 to vector<8x32xf32>
    %147 = arith.maximumf %145, %146 : vector<8x32xf32>
    %148 = vector.broadcast %94 : vector<1x32xf32> to vector<8x32xf32>
    %149 = arith.mulf %147, %148 : vector<8x32xf32>
    %150 = vector.shape_cast %149 : vector<8x32xf32> to vector<1x8x32xf32>
    %cst_74 = arith.constant dense<0.000000e+00> : vector<1xf32>
    %151 = vector.multi_reduction <add>, %150, %cst_74 [1, 2] : vector<1x8x32xf32> to vector<1xf32>
    %152 = vector.shape_cast %151 : vector<1xf32> to vector<1x1x1xf32>
    %153 = vector.extract %152[0, 0, 0] : f32 from vector<1x1x1xf32>
    %cst_75 = arith.constant 8.000000e+00 : f32
    %154 = arith.divf %153, %cst_75 : f32
    %155 = arith.addf %154, %95 : f32
    %156 = arith.negf %155 : f32
    %157 = math.exp %156 : f32
    %cst_76 = arith.constant 1.000000e+00 : f32
    %158 = arith.addf %cst_76, %157 : f32
    %159 = arith.divf %cst_76, %158 : f32
    %160 = vector.broadcast %159 : f32 to vector<8x16xf32>
    %161 = arith.mulf %160, %4 : vector<8x16xf32>
    %cst_77 = arith.constant 1.000000e+00 : f32
    %162 = arith.subf %cst_77, %159 : f32
    %163 = vector.broadcast %162 : f32 to vector<8x16xf32>
    %164 = arith.mulf %163, %11 : vector<8x16xf32>
    %165 = arith.addf %161, %164 : vector<8x16xf32>
    %166 = vector.broadcast %142 : vector<1x16xf32> to vector<8x16xf32>
    %167 = arith.mulf %165, %166 : vector<8x16xf32>
    %cst_78 = arith.constant dense<0.000000e+00> : vector<8xf32>
    %168 = vector.multi_reduction <add>, %167, %cst_78 [1] : vector<8x16xf32> to vector<8xf32>
    %169 = vector.shape_cast %168 : vector<8xf32> to vector<8x1xf32>
    %170 = arith.subf %169, %6 : vector<8x1xf32>
    %171 = arith.mulf %170, %170 : vector<8x1xf32>
    %172 = vector.shape_cast %171 : vector<8x1xf32> to vector<1x8x1xf32>
    %cst_79 = arith.constant dense<0.000000e+00> : vector<1xf32>
    %173 = vector.multi_reduction <add>, %172, %cst_79 [1, 2] : vector<1x8x1xf32> to vector<1xf32>
    %174 = vector.shape_cast %173 : vector<1xf32> to vector<1x1x1xf32>
    %175 = vector.extract %174[0, 0, 0] : f32 from vector<1x1x1xf32>
    %cst_80 = arith.constant 8.000000e+00 : f32
    %176 = arith.divf %175, %cst_80 : f32
    %177 = arith.subf %169, %13 : vector<8x1xf32>
    %178 = arith.mulf %177, %177 : vector<8x1xf32>
    %179 = vector.shape_cast %178 : vector<8x1xf32> to vector<1x8x1xf32>
    %cst_81 = arith.constant dense<0.000000e+00> : vector<1xf32>
    %180 = vector.multi_reduction <add>, %179, %cst_81 [1, 2] : vector<1x8x1xf32> to vector<1xf32>
    %181 = vector.shape_cast %180 : vector<1xf32> to vector<1x1x1xf32>
    %182 = vector.extract %181[0, 0, 0] : f32 from vector<1x1x1xf32>
    %cst_82 = arith.constant 8.000000e+00 : f32
    %183 = arith.divf %182, %cst_82 : f32
    %184 = arith.mulf %159, %176 : f32
    %cst_83 = arith.constant 1.000000e+00 : f32
    %185 = arith.subf %cst_83, %159 : f32
    %186 = arith.mulf %185, %183 : f32
    %187 = arith.addf %184, %186 : f32
    %c0_84 = arith.constant 0 : index
    %188 = memref.load %arg14[%c0_84] : memref<4xf32, #tpu.memory_space<smem>>
    memref.store %187, %arg14[%c0_84] : memref<4xf32, #tpu.memory_space<smem>>
    %189 = arith.subf %169, %6 : vector<8x1xf32>
    %190 = vector.broadcast %159 : f32 to vector<8x1xf32>
    %191 = arith.mulf %190, %189 : vector<8x1xf32>
    %cst_85 = arith.constant 1.000000e+00 : f32
    %192 = arith.subf %cst_85, %159 : f32
    %193 = arith.subf %169, %13 : vector<8x1xf32>
    %194 = vector.broadcast %192 : f32 to vector<8x1xf32>
    %195 = arith.mulf %194, %193 : vector<8x1xf32>
    %196 = arith.addf %191, %195 : vector<8x1xf32>
    %cst_86 = arith.constant 2.500000e-01 : f32
    %197 = vector.broadcast %cst_86 : f32 to vector<8x1xf32>
    %198 = arith.mulf %197, %196 : vector<8x1xf32>
    %199 = vector.broadcast %198 : vector<8x1xf32> to vector<8x16xf32>
    %200 = arith.mulf %199, %165 : vector<8x16xf32>
    %cst_87 = arith.constant dense<0.000000e+00> : vector<16xf32>
    %201 = vector.multi_reduction <add>, %200, %cst_87 [0] : vector<8x16xf32> to vector<16xf32>
    %202 = vector.shape_cast %201 : vector<16xf32> to vector<1x16xf32>
    %cst_88 = arith.constant 0.000000e+00 : f32
    %203 = vector.broadcast %cst_88 : f32 to vector<8x32xf32>
    %204 = arith.cmpf ogt, %147, %203 : vector<8x32xf32>
    %205 = arith.extui %204 : vector<8x32xi1> to vector<8x32xi32>
    %206 = arith.sitofp %205 : vector<8x32xi32> to vector<8x32xf32>
    %cst_89 = arith.constant dense<0.000000e+00> : vector<32xf32>
    %207 = vector.multi_reduction <add>, %206, %cst_89 [0] : vector<8x32xf32> to vector<32xf32>
    %208 = vector.shape_cast %207 : vector<32xf32> to vector<1x32xf32>
    %209 = arith.mulf %208, %94 : vector<1x32xf32>
    %cst_90 = arith.constant dense<0.000000e+00> : vector<1x16xf32>
    %210 = tpu.matmul %209, %97, %cst_90 {dimension_numbers = #tpu.dot_dimension_numbers<[1], [0], [0], [1], [0, 0, 1, 1], [], []>} : vector<1x32xf32>, vector<32x16xf32>, vector<1x16xf32> -> vector<1x16xf32>
    %cst_91 = arith.constant 1.000000e+00 : f32
    %211 = arith.subf %cst_91, %159 : f32
    %212 = arith.mulf %159, %211 : f32
    %cst_92 = arith.constant 8.000000e+00 : f32
    %213 = arith.divf %212, %cst_92 : f32
    %214 = vector.broadcast %213 : f32 to vector<1x16xf32>
    %215 = arith.mulf %214, %210 : vector<1x16xf32>
    %216 = arith.subf %4, %11 : vector<8x16xf32>
    %217 = vector.broadcast %142 : vector<1x16xf32> to vector<8x16xf32>
    %218 = arith.mulf %216, %217 : vector<8x16xf32>
    %cst_93 = arith.constant dense<0.000000e+00> : vector<8xf32>
    %219 = vector.multi_reduction <add>, %218, %cst_93 [1] : vector<8x16xf32> to vector<8xf32>
    %220 = vector.shape_cast %219 : vector<8xf32> to vector<8x1xf32>
    %221 = arith.mulf %198, %220 : vector<8x1xf32>
    %222 = vector.shape_cast %221 : vector<8x1xf32> to vector<1x8x1xf32>
    %cst_94 = arith.constant dense<0.000000e+00> : vector<1xf32>
    %223 = vector.multi_reduction <add>, %222, %cst_94 [1, 2] : vector<1x8x1xf32> to vector<1xf32>
    %224 = vector.shape_cast %223 : vector<1xf32> to vector<1x1x1xf32>
    %225 = vector.extract %224[0, 0, 0] : f32 from vector<1x1x1xf32>
    %226 = arith.subf %176, %183 : f32
    %227 = arith.addf %225, %226 : f32
    %228 = vector.broadcast %227 : f32 to vector<1x16xf32>
    %229 = arith.mulf %228, %215 : vector<1x16xf32>
    %230 = arith.addf %202, %229 : vector<1x16xf32>
    %cst_95 = arith.constant 1.000000e-03 : f32
    %231 = vector.broadcast %cst_95 : f32 to vector<1x16xf32>
    %232 = arith.mulf %231, %230 : vector<1x16xf32>
    %233 = arith.subf %142, %232 : vector<1x16xf32>
    %234 = vector.broadcast %233 : vector<1x16xf32> to vector<8x16xf32>
    %235 = arith.mulf %18, %234 : vector<8x16xf32>
    %cst_96 = arith.constant dense<0.000000e+00> : vector<8xf32>
    %236 = vector.multi_reduction <add>, %235, %cst_96 [1] : vector<8x16xf32> to vector<8xf32>
    %237 = vector.shape_cast %236 : vector<8xf32> to vector<8x1xf32>
    %238 = arith.subf %237, %20 : vector<8x1xf32>
    %239 = arith.mulf %238, %238 : vector<8x1xf32>
    %240 = vector.shape_cast %239 : vector<8x1xf32> to vector<1x8x1xf32>
    %cst_97 = arith.constant dense<0.000000e+00> : vector<1xf32>
    %241 = vector.multi_reduction <add>, %240, %cst_97 [1, 2] : vector<1x8x1xf32> to vector<1xf32>
    %242 = vector.shape_cast %241 : vector<1xf32> to vector<1x1x1xf32>
    %243 = vector.extract %242[0, 0, 0] : f32 from vector<1x1x1xf32>
    %cst_98 = arith.constant 8.000000e+00 : f32
    %244 = arith.divf %243, %cst_98 : f32
    %cst_99 = arith.constant 0.000000e+00 : f32
    %245 = arith.addf %cst_99, %244 : f32
    %cst_100 = arith.constant dense<0.000000e+00> : vector<1x32xf32>
    %246 = tpu.matmul %233, %96, %cst_100 {dimension_numbers = #tpu.dot_dimension_numbers<[1], [0], [0], [1], [0, 0, 1, 1], [], []>} : vector<1x16xf32>, vector<16x32xf32>, vector<1x32xf32> -> vector<1x32xf32>
    %247 = vector.broadcast %246 : vector<1x32xf32> to vector<8x32xf32>
    %248 = arith.addf %119, %247 : vector<8x32xf32>
    %cst_101 = arith.constant 0.000000e+00 : f32
    %249 = vector.broadcast %cst_101 : f32 to vector<8x32xf32>
    %250 = arith.maximumf %248, %249 : vector<8x32xf32>
    %251 = vector.broadcast %94 : vector<1x32xf32> to vector<8x32xf32>
    %252 = arith.mulf %250, %251 : vector<8x32xf32>
    %253 = vector.shape_cast %252 : vector<8x32xf32> to vector<1x8x32xf32>
    %cst_102 = arith.constant dense<0.000000e+00> : vector<1xf32>
    %254 = vector.multi_reduction <add>, %253, %cst_102 [1, 2] : vector<1x8x32xf32> to vector<1xf32>
    %255 = vector.shape_cast %254 : vector<1xf32> to vector<1x1x1xf32>
    %256 = vector.extract %255[0, 0, 0] : f32 from vector<1x1x1xf32>
    %cst_103 = arith.constant 8.000000e+00 : f32
    %257 = arith.divf %256, %cst_103 : f32
    %258 = arith.addf %257, %95 : f32
    %259 = arith.negf %258 : f32
    %260 = math.exp %259 : f32
    %cst_104 = arith.constant 1.000000e+00 : f32
    %261 = arith.addf %cst_104, %260 : f32
    %262 = arith.divf %cst_104, %261 : f32
    %263 = vector.broadcast %262 : f32 to vector<8x16xf32>
    %264 = arith.mulf %263, %26 : vector<8x16xf32>
    %cst_105 = arith.constant 1.000000e+00 : f32
    %265 = arith.subf %cst_105, %262 : f32
    %266 = vector.broadcast %265 : f32 to vector<8x16xf32>
    %267 = arith.mulf %266, %33 : vector<8x16xf32>
    %268 = arith.addf %264, %267 : vector<8x16xf32>
    %269 = vector.broadcast %233 : vector<1x16xf32> to vector<8x16xf32>
    %270 = arith.mulf %268, %269 : vector<8x16xf32>
    %cst_106 = arith.constant dense<0.000000e+00> : vector<8xf32>
    %271 = vector.multi_reduction <add>, %270, %cst_106 [1] : vector<8x16xf32> to vector<8xf32>
    %272 = vector.shape_cast %271 : vector<8xf32> to vector<8x1xf32>
    %273 = arith.subf %272, %28 : vector<8x1xf32>
    %274 = arith.mulf %273, %273 : vector<8x1xf32>
    %275 = vector.shape_cast %274 : vector<8x1xf32> to vector<1x8x1xf32>
    %cst_107 = arith.constant dense<0.000000e+00> : vector<1xf32>
    %276 = vector.multi_reduction <add>, %275, %cst_107 [1, 2] : vector<1x8x1xf32> to vector<1xf32>
    %277 = vector.shape_cast %276 : vector<1xf32> to vector<1x1x1xf32>
    %278 = vector.extract %277[0, 0, 0] : f32 from vector<1x1x1xf32>
    %cst_108 = arith.constant 8.000000e+00 : f32
    %279 = arith.divf %278, %cst_108 : f32
    %280 = arith.subf %272, %35 : vector<8x1xf32>
    %281 = arith.mulf %280, %280 : vector<8x1xf32>
    %282 = vector.shape_cast %281 : vector<8x1xf32> to vector<1x8x1xf32>
    %cst_109 = arith.constant dense<0.000000e+00> : vector<1xf32>
    %283 = vector.multi_reduction <add>, %282, %cst_109 [1, 2] : vector<1x8x1xf32> to vector<1xf32>
    %284 = vector.shape_cast %283 : vector<1xf32> to vector<1x1x1xf32>
    %285 = vector.extract %284[0, 0, 0] : f32 from vector<1x1x1xf32>
    %cst_110 = arith.constant 8.000000e+00 : f32
    %286 = arith.divf %285, %cst_110 : f32
    %287 = arith.mulf %262, %279 : f32
    %cst_111 = arith.constant 1.000000e+00 : f32
    %288 = arith.subf %cst_111, %262 : f32
    %289 = arith.mulf %288, %286 : f32
    %290 = arith.addf %287, %289 : f32
    %c1_112 = arith.constant 1 : index
    %291 = memref.load %arg14[%c1_112] : memref<4xf32, #tpu.memory_space<smem>>
    memref.store %290, %arg14[%c1_112] : memref<4xf32, #tpu.memory_space<smem>>
    %292 = arith.subf %272, %28 : vector<8x1xf32>
    %293 = vector.broadcast %262 : f32 to vector<8x1xf32>
    %294 = arith.mulf %293, %292 : vector<8x1xf32>
    %cst_113 = arith.constant 1.000000e+00 : f32
    %295 = arith.subf %cst_113, %262 : f32
    %296 = arith.subf %272, %35 : vector<8x1xf32>
    %297 = vector.broadcast %295 : f32 to vector<8x1xf32>
    %298 = arith.mulf %297, %296 : vector<8x1xf32>
    %299 = arith.addf %294, %298 : vector<8x1xf32>
    %cst_114 = arith.constant 2.500000e-01 : f32
    %300 = vector.broadcast %cst_114 : f32 to vector<8x1xf32>
    %301 = arith.mulf %300, %299 : vector<8x1xf32>
    %302 = vector.broadcast %301 : vector<8x1xf32> to vector<8x16xf32>
    %303 = arith.mulf %302, %268 : vector<8x16xf32>
    %cst_115 = arith.constant dense<0.000000e+00> : vector<16xf32>
    %304 = vector.multi_reduction <add>, %303, %cst_115 [0] : vector<8x16xf32> to vector<16xf32>
    %305 = vector.shape_cast %304 : vector<16xf32> to vector<1x16xf32>
    %cst_116 = arith.constant 0.000000e+00 : f32
    %306 = vector.broadcast %cst_116 : f32 to vector<8x32xf32>
    %307 = arith.cmpf ogt, %250, %306 : vector<8x32xf32>
    %308 = arith.extui %307 : vector<8x32xi1> to vector<8x32xi32>
    %309 = arith.sitofp %308 : vector<8x32xi32> to vector<8x32xf32>
    %cst_117 = arith.constant dense<0.000000e+00> : vector<32xf32>
    %310 = vector.multi_reduction <add>, %309, %cst_117 [0] : vector<8x32xf32> to vector<32xf32>
    %311 = vector.shape_cast %310 : vector<32xf32> to vector<1x32xf32>
    %312 = arith.mulf %311, %94 : vector<1x32xf32>
    %cst_118 = arith.constant dense<0.000000e+00> : vector<1x16xf32>
    %313 = tpu.matmul %312, %97, %cst_118 {dimension_numbers = #tpu.dot_dimension_numbers<[1], [0], [0], [1], [0, 0, 1, 1], [], []>} : vector<1x32xf32>, vector<32x16xf32>, vector<1x16xf32> -> vector<1x16xf32>
    %cst_119 = arith.constant 1.000000e+00 : f32
    %314 = arith.subf %cst_119, %262 : f32
    %315 = arith.mulf %262, %314 : f32
    %cst_120 = arith.constant 8.000000e+00 : f32
    %316 = arith.divf %315, %cst_120 : f32
    %317 = vector.broadcast %316 : f32 to vector<1x16xf32>
    %318 = arith.mulf %317, %313 : vector<1x16xf32>
    %319 = arith.subf %26, %33 : vector<8x16xf32>
    %320 = vector.broadcast %233 : vector<1x16xf32> to vector<8x16xf32>
    %321 = arith.mulf %319, %320 : vector<8x16xf32>
    %cst_121 = arith.constant dense<0.000000e+00> : vector<8xf32>
    %322 = vector.multi_reduction <add>, %321, %cst_121 [1] : vector<8x16xf32> to vector<8xf32>
    %323 = vector.shape_cast %322 : vector<8xf32> to vector<8x1xf32>
    %324 = arith.mulf %301, %323 : vector<8x1xf32>
    %325 = vector.shape_cast %324 : vector<8x1xf32> to vector<1x8x1xf32>
    %cst_122 = arith.constant dense<0.000000e+00> : vector<1xf32>
    %326 = vector.multi_reduction <add>, %325, %cst_122 [1, 2] : vector<1x8x1xf32> to vector<1xf32>
    %327 = vector.shape_cast %326 : vector<1xf32> to vector<1x1x1xf32>
    %328 = vector.extract %327[0, 0, 0] : f32 from vector<1x1x1xf32>
    %329 = arith.subf %279, %286 : f32
    %330 = arith.addf %328, %329 : f32
    %331 = vector.broadcast %330 : f32 to vector<1x16xf32>
    %332 = arith.mulf %331, %318 : vector<1x16xf32>
    %333 = arith.addf %305, %332 : vector<1x16xf32>
    %cst_123 = arith.constant 1.000000e-03 : f32
    %334 = vector.broadcast %cst_123 : f32 to vector<1x16xf32>
    %335 = arith.mulf %334, %333 : vector<1x16xf32>
    %336 = arith.subf %233, %335 : vector<1x16xf32>
    %337 = vector.broadcast %336 : vector<1x16xf32> to vector<8x16xf32>
    %338 = arith.mulf %40, %337 : vector<8x16xf32>
    %cst_124 = arith.constant dense<0.000000e+00> : vector<8xf32>
    %339 = vector.multi_reduction <add>, %338, %cst_124 [1] : vector<8x16xf32> to vector<8xf32>
    %340 = vector.shape_cast %339 : vector<8xf32> to vector<8x1xf32>
    %341 = arith.subf %340, %42 : vector<8x1xf32>
    %342 = arith.mulf %341, %341 : vector<8x1xf32>
    %343 = vector.shape_cast %342 : vector<8x1xf32> to vector<1x8x1xf32>
    %cst_125 = arith.constant dense<0.000000e+00> : vector<1xf32>
    %344 = vector.multi_reduction <add>, %343, %cst_125 [1, 2] : vector<1x8x1xf32> to vector<1xf32>
    %345 = vector.shape_cast %344 : vector<1xf32> to vector<1x1x1xf32>
    %346 = vector.extract %345[0, 0, 0] : f32 from vector<1x1x1xf32>
    %cst_126 = arith.constant 8.000000e+00 : f32
    %347 = arith.divf %346, %cst_126 : f32
    %348 = arith.addf %245, %347 : f32
    %cst_127 = arith.constant dense<0.000000e+00> : vector<1x32xf32>
    %349 = tpu.matmul %336, %96, %cst_127 {dimension_numbers = #tpu.dot_dimension_numbers<[1], [0], [0], [1], [0, 0, 1, 1], [], []>} : vector<1x16xf32>, vector<16x32xf32>, vector<1x32xf32> -> vector<1x32xf32>
    %350 = vector.broadcast %349 : vector<1x32xf32> to vector<8x32xf32>
    %351 = arith.addf %130, %350 : vector<8x32xf32>
    %cst_128 = arith.constant 0.000000e+00 : f32
    %352 = vector.broadcast %cst_128 : f32 to vector<8x32xf32>
    %353 = arith.maximumf %351, %352 : vector<8x32xf32>
    %354 = vector.broadcast %94 : vector<1x32xf32> to vector<8x32xf32>
    %355 = arith.mulf %353, %354 : vector<8x32xf32>
    %356 = vector.shape_cast %355 : vector<8x32xf32> to vector<1x8x32xf32>
    %cst_129 = arith.constant dense<0.000000e+00> : vector<1xf32>
    %357 = vector.multi_reduction <add>, %356, %cst_129 [1, 2] : vector<1x8x32xf32> to vector<1xf32>
    %358 = vector.shape_cast %357 : vector<1xf32> to vector<1x1x1xf32>
    %359 = vector.extract %358[0, 0, 0] : f32 from vector<1x1x1xf32>
    %cst_130 = arith.constant 8.000000e+00 : f32
    %360 = arith.divf %359, %cst_130 : f32
    %361 = arith.addf %360, %95 : f32
    %362 = arith.negf %361 : f32
    %363 = math.exp %362 : f32
    %cst_131 = arith.constant 1.000000e+00 : f32
    %364 = arith.addf %cst_131, %363 : f32
    %365 = arith.divf %cst_131, %364 : f32
    %366 = vector.broadcast %365 : f32 to vector<8x16xf32>
    %367 = arith.mulf %366, %48 : vector<8x16xf32>
    %cst_132 = arith.constant 1.000000e+00 : f32
    %368 = arith.subf %cst_132, %365 : f32
    %369 = vector.broadcast %368 : f32 to vector<8x16xf32>
    %370 = arith.mulf %369, %55 : vector<8x16xf32>
    %371 = arith.addf %367, %370 : vector<8x16xf32>
    %372 = vector.broadcast %336 : vector<1x16xf32> to vector<8x16xf32>
    %373 = arith.mulf %371, %372 : vector<8x16xf32>
    %cst_133 = arith.constant dense<0.000000e+00> : vector<8xf32>
    %374 = vector.multi_reduction <add>, %373, %cst_133 [1] : vector<8x16xf32> to vector<8xf32>
    %375 = vector.shape_cast %374 : vector<8xf32> to vector<8x1xf32>
    %376 = arith.subf %375, %50 : vector<8x1xf32>
    %377 = arith.mulf %376, %376 : vector<8x1xf32>
    %378 = vector.shape_cast %377 : vector<8x1xf32> to vector<1x8x1xf32>
    %cst_134 = arith.constant dense<0.000000e+00> : vector<1xf32>
    %379 = vector.multi_reduction <add>, %378, %cst_134 [1, 2] : vector<1x8x1xf32> to vector<1xf32>
    %380 = vector.shape_cast %379 : vector<1xf32> to vector<1x1x1xf32>
    %381 = vector.extract %380[0, 0, 0] : f32 from vector<1x1x1xf32>
    %cst_135 = arith.constant 8.000000e+00 : f32
    %382 = arith.divf %381, %cst_135 : f32
    %383 = arith.subf %375, %57 : vector<8x1xf32>
    %384 = arith.mulf %383, %383 : vector<8x1xf32>
    %385 = vector.shape_cast %384 : vector<8x1xf32> to vector<1x8x1xf32>
    %cst_136 = arith.constant dense<0.000000e+00> : vector<1xf32>
    %386 = vector.multi_reduction <add>, %385, %cst_136 [1, 2] : vector<1x8x1xf32> to vector<1xf32>
    %387 = vector.shape_cast %386 : vector<1xf32> to vector<1x1x1xf32>
    %388 = vector.extract %387[0, 0, 0] : f32 from vector<1x1x1xf32>
    %cst_137 = arith.constant 8.000000e+00 : f32
    %389 = arith.divf %388, %cst_137 : f32
    %390 = arith.mulf %365, %382 : f32
    %cst_138 = arith.constant 1.000000e+00 : f32
    %391 = arith.subf %cst_138, %365 : f32
    %392 = arith.mulf %391, %389 : f32
    %393 = arith.addf %390, %392 : f32
    %c2_139 = arith.constant 2 : index
    %394 = memref.load %arg14[%c2_139] : memref<4xf32, #tpu.memory_space<smem>>
    memref.store %393, %arg14[%c2_139] : memref<4xf32, #tpu.memory_space<smem>>
    %395 = arith.subf %375, %50 : vector<8x1xf32>
    %396 = vector.broadcast %365 : f32 to vector<8x1xf32>
    %397 = arith.mulf %396, %395 : vector<8x1xf32>
    %cst_140 = arith.constant 1.000000e+00 : f32
    %398 = arith.subf %cst_140, %365 : f32
    %399 = arith.subf %375, %57 : vector<8x1xf32>
    %400 = vector.broadcast %398 : f32 to vector<8x1xf32>
    %401 = arith.mulf %400, %399 : vector<8x1xf32>
    %402 = arith.addf %397, %401 : vector<8x1xf32>
    %cst_141 = arith.constant 2.500000e-01 : f32
    %403 = vector.broadcast %cst_141 : f32 to vector<8x1xf32>
    %404 = arith.mulf %403, %402 : vector<8x1xf32>
    %405 = vector.broadcast %404 : vector<8x1xf32> to vector<8x16xf32>
    %406 = arith.mulf %405, %371 : vector<8x16xf32>
    %cst_142 = arith.constant dense<0.000000e+00> : vector<16xf32>
    %407 = vector.multi_reduction <add>, %406, %cst_142 [0] : vector<8x16xf32> to vector<16xf32>
    %408 = vector.shape_cast %407 : vector<16xf32> to vector<1x16xf32>
    %cst_143 = arith.constant 0.000000e+00 : f32
    %409 = vector.broadcast %cst_143 : f32 to vector<8x32xf32>
    %410 = arith.cmpf ogt, %353, %409 : vector<8x32xf32>
    %411 = arith.extui %410 : vector<8x32xi1> to vector<8x32xi32>
    %412 = arith.sitofp %411 : vector<8x32xi32> to vector<8x32xf32>
    %cst_144 = arith.constant dense<0.000000e+00> : vector<32xf32>
    %413 = vector.multi_reduction <add>, %412, %cst_144 [0] : vector<8x32xf32> to vector<32xf32>
    %414 = vector.shape_cast %413 : vector<32xf32> to vector<1x32xf32>
    %415 = arith.mulf %414, %94 : vector<1x32xf32>
    %cst_145 = arith.constant dense<0.000000e+00> : vector<1x16xf32>
    %416 = tpu.matmul %415, %97, %cst_145 {dimension_numbers = #tpu.dot_dimension_numbers<[1], [0], [0], [1], [0, 0, 1, 1], [], []>} : vector<1x32xf32>, vector<32x16xf32>, vector<1x16xf32> -> vector<1x16xf32>
    %cst_146 = arith.constant 1.000000e+00 : f32
    %417 = arith.subf %cst_146, %365 : f32
    %418 = arith.mulf %365, %417 : f32
    %cst_147 = arith.constant 8.000000e+00 : f32
    %419 = arith.divf %418, %cst_147 : f32
    %420 = vector.broadcast %419 : f32 to vector<1x16xf32>
    %421 = arith.mulf %420, %416 : vector<1x16xf32>
    %422 = arith.subf %48, %55 : vector<8x16xf32>
    %423 = vector.broadcast %336 : vector<1x16xf32> to vector<8x16xf32>
    %424 = arith.mulf %422, %423 : vector<8x16xf32>
    %cst_148 = arith.constant dense<0.000000e+00> : vector<8xf32>
    %425 = vector.multi_reduction <add>, %424, %cst_148 [1] : vector<8x16xf32> to vector<8xf32>
    %426 = vector.shape_cast %425 : vector<8xf32> to vector<8x1xf32>
    %427 = arith.mulf %404, %426 : vector<8x1xf32>
    %428 = vector.shape_cast %427 : vector<8x1xf32> to vector<1x8x1xf32>
    %cst_149 = arith.constant dense<0.000000e+00> : vector<1xf32>
    %429 = vector.multi_reduction <add>, %428, %cst_149 [1, 2] : vector<1x8x1xf32> to vector<1xf32>
    %430 = vector.shape_cast %429 : vector<1xf32> to vector<1x1x1xf32>
    %431 = vector.extract %430[0, 0, 0] : f32 from vector<1x1x1xf32>
    %432 = arith.subf %382, %389 : f32
    %433 = arith.addf %431, %432 : f32
    %434 = vector.broadcast %433 : f32 to vector<1x16xf32>
    %435 = arith.mulf %434, %421 : vector<1x16xf32>
    %436 = arith.addf %408, %435 : vector<1x16xf32>
    %cst_150 = arith.constant 1.000000e-03 : f32
    %437 = vector.broadcast %cst_150 : f32 to vector<1x16xf32>
    %438 = arith.mulf %437, %436 : vector<1x16xf32>
    %439 = arith.subf %336, %438 : vector<1x16xf32>
    %440 = vector.broadcast %439 : vector<1x16xf32> to vector<8x16xf32>
    %441 = arith.mulf %62, %440 : vector<8x16xf32>
    %cst_151 = arith.constant dense<0.000000e+00> : vector<8xf32>
    %442 = vector.multi_reduction <add>, %441, %cst_151 [1] : vector<8x16xf32> to vector<8xf32>
    %443 = vector.shape_cast %442 : vector<8xf32> to vector<8x1xf32>
    %444 = arith.subf %443, %64 : vector<8x1xf32>
    %445 = arith.mulf %444, %444 : vector<8x1xf32>
    %446 = vector.shape_cast %445 : vector<8x1xf32> to vector<1x8x1xf32>
    %cst_152 = arith.constant dense<0.000000e+00> : vector<1xf32>
    %447 = vector.multi_reduction <add>, %446, %cst_152 [1, 2] : vector<1x8x1xf32> to vector<1xf32>
    %448 = vector.shape_cast %447 : vector<1xf32> to vector<1x1x1xf32>
    %449 = vector.extract %448[0, 0, 0] : f32 from vector<1x1x1xf32>
    %cst_153 = arith.constant 8.000000e+00 : f32
    %450 = arith.divf %449, %cst_153 : f32
    %451 = arith.addf %348, %450 : f32
    %cst_154 = arith.constant dense<0.000000e+00> : vector<1x32xf32>
    %452 = tpu.matmul %439, %96, %cst_154 {dimension_numbers = #tpu.dot_dimension_numbers<[1], [0], [0], [1], [0, 0, 1, 1], [], []>} : vector<1x16xf32>, vector<16x32xf32>, vector<1x32xf32> -> vector<1x32xf32>
    %453 = vector.broadcast %452 : vector<1x32xf32> to vector<8x32xf32>
    %454 = arith.addf %141, %453 : vector<8x32xf32>
    %cst_155 = arith.constant 0.000000e+00 : f32
    %455 = vector.broadcast %cst_155 : f32 to vector<8x32xf32>
    %456 = arith.maximumf %454, %455 : vector<8x32xf32>
    %457 = vector.broadcast %94 : vector<1x32xf32> to vector<8x32xf32>
    %458 = arith.mulf %456, %457 : vector<8x32xf32>
    %459 = vector.shape_cast %458 : vector<8x32xf32> to vector<1x8x32xf32>
    %cst_156 = arith.constant dense<0.000000e+00> : vector<1xf32>
    %460 = vector.multi_reduction <add>, %459, %cst_156 [1, 2] : vector<1x8x32xf32> to vector<1xf32>
    %461 = vector.shape_cast %460 : vector<1xf32> to vector<1x1x1xf32>
    %462 = vector.extract %461[0, 0, 0] : f32 from vector<1x1x1xf32>
    %cst_157 = arith.constant 8.000000e+00 : f32
    %463 = arith.divf %462, %cst_157 : f32
    %464 = arith.addf %463, %95 : f32
    %465 = arith.negf %464 : f32
    %466 = math.exp %465 : f32
    %cst_158 = arith.constant 1.000000e+00 : f32
    %467 = arith.addf %cst_158, %466 : f32
    %468 = arith.divf %cst_158, %467 : f32
    %469 = vector.broadcast %468 : f32 to vector<8x16xf32>
    %470 = arith.mulf %469, %70 : vector<8x16xf32>
    %cst_159 = arith.constant 1.000000e+00 : f32
    %471 = arith.subf %cst_159, %468 : f32
    %472 = vector.broadcast %471 : f32 to vector<8x16xf32>
    %473 = arith.mulf %472, %77 : vector<8x16xf32>
    %474 = arith.addf %470, %473 : vector<8x16xf32>
    %475 = vector.broadcast %439 : vector<1x16xf32> to vector<8x16xf32>
    %476 = arith.mulf %474, %475 : vector<8x16xf32>
    %cst_160 = arith.constant dense<0.000000e+00> : vector<8xf32>
    %477 = vector.multi_reduction <add>, %476, %cst_160 [1] : vector<8x16xf32> to vector<8xf32>
    %478 = vector.shape_cast %477 : vector<8xf32> to vector<8x1xf32>
    %479 = arith.subf %478, %72 : vector<8x1xf32>
    %480 = arith.mulf %479, %479 : vector<8x1xf32>
    %481 = vector.shape_cast %480 : vector<8x1xf32> to vector<1x8x1xf32>
    %cst_161 = arith.constant dense<0.000000e+00> : vector<1xf32>
    %482 = vector.multi_reduction <add>, %481, %cst_161 [1, 2] : vector<1x8x1xf32> to vector<1xf32>
    %483 = vector.shape_cast %482 : vector<1xf32> to vector<1x1x1xf32>
    %484 = vector.extract %483[0, 0, 0] : f32 from vector<1x1x1xf32>
    %cst_162 = arith.constant 8.000000e+00 : f32
    %485 = arith.divf %484, %cst_162 : f32
    %486 = arith.subf %478, %79 : vector<8x1xf32>
    %487 = arith.mulf %486, %486 : vector<8x1xf32>
    %488 = vector.shape_cast %487 : vector<8x1xf32> to vector<1x8x1xf32>
    %cst_163 = arith.constant dense<0.000000e+00> : vector<1xf32>
    %489 = vector.multi_reduction <add>, %488, %cst_163 [1, 2] : vector<1x8x1xf32> to vector<1xf32>
    %490 = vector.shape_cast %489 : vector<1xf32> to vector<1x1x1xf32>
    %491 = vector.extract %490[0, 0, 0] : f32 from vector<1x1x1xf32>
    %cst_164 = arith.constant 8.000000e+00 : f32
    %492 = arith.divf %491, %cst_164 : f32
    %493 = arith.mulf %468, %485 : f32
    %cst_165 = arith.constant 1.000000e+00 : f32
    %494 = arith.subf %cst_165, %468 : f32
    %495 = arith.mulf %494, %492 : f32
    %496 = arith.addf %493, %495 : f32
    %c3_166 = arith.constant 3 : index
    %497 = memref.load %arg14[%c3_166] : memref<4xf32, #tpu.memory_space<smem>>
    memref.store %496, %arg14[%c3_166] : memref<4xf32, #tpu.memory_space<smem>>
    %498 = arith.subf %478, %72 : vector<8x1xf32>
    %499 = vector.broadcast %468 : f32 to vector<8x1xf32>
    %500 = arith.mulf %499, %498 : vector<8x1xf32>
    %cst_167 = arith.constant 1.000000e+00 : f32
    %501 = arith.subf %cst_167, %468 : f32
    %502 = arith.subf %478, %79 : vector<8x1xf32>
    %503 = vector.broadcast %501 : f32 to vector<8x1xf32>
    %504 = arith.mulf %503, %502 : vector<8x1xf32>
    %505 = arith.addf %500, %504 : vector<8x1xf32>
    %cst_168 = arith.constant 2.500000e-01 : f32
    %506 = vector.broadcast %cst_168 : f32 to vector<8x1xf32>
    %507 = arith.mulf %506, %505 : vector<8x1xf32>
    %508 = vector.broadcast %507 : vector<8x1xf32> to vector<8x16xf32>
    %509 = arith.mulf %508, %474 : vector<8x16xf32>
    %cst_169 = arith.constant dense<0.000000e+00> : vector<16xf32>
    %510 = vector.multi_reduction <add>, %509, %cst_169 [0] : vector<8x16xf32> to vector<16xf32>
    %511 = vector.shape_cast %510 : vector<16xf32> to vector<1x16xf32>
    %cst_170 = arith.constant 0.000000e+00 : f32
    %512 = vector.broadcast %cst_170 : f32 to vector<8x32xf32>
    %513 = arith.cmpf ogt, %456, %512 : vector<8x32xf32>
    %514 = arith.extui %513 : vector<8x32xi1> to vector<8x32xi32>
    %515 = arith.sitofp %514 : vector<8x32xi32> to vector<8x32xf32>
    %cst_171 = arith.constant dense<0.000000e+00> : vector<32xf32>
    %516 = vector.multi_reduction <add>, %515, %cst_171 [0] : vector<8x32xf32> to vector<32xf32>
    %517 = vector.shape_cast %516 : vector<32xf32> to vector<1x32xf32>
    %518 = arith.mulf %517, %94 : vector<1x32xf32>
    %cst_172 = arith.constant dense<0.000000e+00> : vector<1x16xf32>
    %519 = tpu.matmul %518, %97, %cst_172 {dimension_numbers = #tpu.dot_dimension_numbers<[1], [0], [0], [1], [0, 0, 1, 1], [], []>} : vector<1x32xf32>, vector<32x16xf32>, vector<1x16xf32> -> vector<1x16xf32>
    %cst_173 = arith.constant 1.000000e+00 : f32
    %520 = arith.subf %cst_173, %468 : f32
    %521 = arith.mulf %468, %520 : f32
    %cst_174 = arith.constant 8.000000e+00 : f32
    %522 = arith.divf %521, %cst_174 : f32
    %523 = vector.broadcast %522 : f32 to vector<1x16xf32>
    %524 = arith.mulf %523, %519 : vector<1x16xf32>
    %525 = arith.subf %70, %77 : vector<8x16xf32>
    %526 = vector.broadcast %439 : vector<1x16xf32> to vector<8x16xf32>
    %527 = arith.mulf %525, %526 : vector<8x16xf32>
    %cst_175 = arith.constant dense<0.000000e+00> : vector<8xf32>
    %528 = vector.multi_reduction <add>, %527, %cst_175 [1] : vector<8x16xf32> to vector<8xf32>
    %529 = vector.shape_cast %528 : vector<8xf32> to vector<8x1xf32>
    %530 = arith.mulf %507, %529 : vector<8x1xf32>
    %531 = vector.shape_cast %530 : vector<8x1xf32> to vector<1x8x1xf32>
    %cst_176 = arith.constant dense<0.000000e+00> : vector<1xf32>
    %532 = vector.multi_reduction <add>, %531, %cst_176 [1, 2] : vector<1x8x1xf32> to vector<1xf32>
    %533 = vector.shape_cast %532 : vector<1xf32> to vector<1x1x1xf32>
    %534 = vector.extract %533[0, 0, 0] : f32 from vector<1x1x1xf32>
    %535 = arith.subf %485, %492 : f32
    %536 = arith.addf %534, %535 : f32
    %537 = vector.broadcast %536 : f32 to vector<1x16xf32>
    %538 = arith.mulf %537, %524 : vector<1x16xf32>
    %539 = arith.addf %511, %538 : vector<1x16xf32>
    %cst_177 = arith.constant 1.000000e-03 : f32
    %540 = vector.broadcast %cst_177 : f32 to vector<1x16xf32>
    %541 = arith.mulf %540, %539 : vector<1x16xf32>
    %542 = arith.subf %439, %541 : vector<1x16xf32>
    %543 = vector.broadcast %542 : vector<1x16xf32> to vector<8x16xf32>
    %544 = arith.mulf %84, %543 : vector<8x16xf32>
    %cst_178 = arith.constant dense<0.000000e+00> : vector<8xf32>
    %545 = vector.multi_reduction <add>, %544, %cst_178 [1] : vector<8x16xf32> to vector<8xf32>
    %546 = vector.shape_cast %545 : vector<8xf32> to vector<8x1xf32>
    %547 = arith.subf %546, %86 : vector<8x1xf32>
    %548 = arith.mulf %547, %547 : vector<8x1xf32>
    %549 = vector.shape_cast %548 : vector<8x1xf32> to vector<1x8x1xf32>
    %cst_179 = arith.constant dense<0.000000e+00> : vector<1xf32>
    %550 = vector.multi_reduction <add>, %549, %cst_179 [1, 2] : vector<1x8x1xf32> to vector<1xf32>
    %551 = vector.shape_cast %550 : vector<1xf32> to vector<1x1x1xf32>
    %552 = vector.extract %551[0, 0, 0] : f32 from vector<1x1x1xf32>
    %cst_180 = arith.constant 8.000000e+00 : f32
    %553 = arith.divf %552, %cst_180 : f32
    %554 = arith.addf %451, %553 : f32
    %c0_181 = arith.constant 0 : index
    %c0_182 = arith.constant 0 : index
    %555 = vector.load %arg12[%c0_181, %c0_182] : memref<1x16xf32, #tpu.memory_space<vmem>>, vector<1x16xf32>
    tpu.vector_store %arg12[%c0_181, %c0_182], %542 {strides = array<i32>} : memref<1x16xf32, #tpu.memory_space<vmem>>, vector<1x16xf32>,
    %c0_183 = arith.constant 0 : index
    %556 = memref.load %arg13[%c0_183] : memref<1xf32, #tpu.memory_space<smem>>
    memref.store %554, %arg13[%c0_183] : memref<1xf32, #tpu.memory_space<smem>>
    return
  }
}

</mosaic_0001>

<llo_original>
// kernel: unrolled_blackbox_optimizer.1
$region0: #{unrolled_blackbox_optimizer.1}
  #allocation0 [shape = 'u32[]', space=smem, size = 0x4, offset = 0x4, fixed_abs, tag = 'smem constant byte address 0x4 - core index']
  #allocation1 [shape = 'u32[144,128]{1,0:T(1,128)}', space=vmem, size = 0x12000, scoped, tag = 'internal scratch']
  #allocation2 [shape = 'f32[1]{0:T(128)S(6)}', space=smem, size = 0x200, scoped, tag = 'scoped memory for unrolled_blackbox_optimizer.1']
  %s0 = inlined_call_operand.vmem [shape: s32[4,3], index: 0, kind: input, shape index: {}]
  %s1 = inlined_call_operand.vmem [shape: f32[64,16], index: 1, kind: input, shape index: {}]
  %s2 = inlined_call_operand.vmem [shape: f32[64,1], index: 2, kind: input, shape index: {}]
  %s3 = inlined_call_operand.vmem [shape: f32[1,16], index: 3, kind: input, shape index: {}]
  %s4 = inlined_call_operand.vmem [shape: f32[32,32], index: 4, kind: input, shape index: {}]
  %s5 = inlined_call_operand.vmem [shape: f32[16,32], index: 5, kind: input, shape index: {}]
  %s6 = inlined_call_operand.vmem [shape: f32[32,16], index: 6, kind: input, shape index: {}]
  %s7 = inlined_call_operand.vmem [shape: f32[1,32], index: 7, kind: input, shape index: {}]
  %s8 = inlined_call_operand.vmem [shape: f32[1,32], index: 8, kind: input, shape index: {}]
  %s9 = inlined_call_operand.vmem [shape: f32[1,32], index: 9, kind: input, shape index: {}]
  %s10 = inlined_call_operand.vmem [shape: f32[1,32], index: 10, kind: input, shape index: {}]
  %s11 = inlined_call_operand.<no memory space> [shape: f32[1], index: 11, kind: input, shape index: {}]
  %s12 = inlined_call_operand.hbm [shape: f32[1,16], index: 12, kind: output, shape index: {0}]
  %s13 = inlined_call_operand.hbm [shape: f32[1], index: 13, kind: output, shape index: {1}]
  %s14 = inlined_call_operand.hbm [shape: f32[4], index: 14, kind: output, shape index: {2}]
  %15 = xla_tuple %s12, %s13, %s14
  %s16 = sld [smem:[#allocation0]]
  $region78: #{unrolled_blackbox_optimizer.1} parent=0
    _
  %s18 = ssub.s32 1, %s16
  %s19 = scalar_select 0, %s18, %s16
  %20 = sst [smem:[#allocation2]] %s11
  $region1: #{unrolled_blackbox_optimizer.1} parent=0
    #allocation3 [shape = 'u8[2048]{0}', space=smem, size = 0x800, scoped, tag = 'input window, operand 0, single buffered']
    #allocation4 [shape = 's32[1]{0}', space=sflag, size = 0x4, scoped, tag = 'scoped memory for unrolled_blackbox_optimizer.1']
    #allocation5 [shape = 's32[1]{0}', space=sflag, size = 0x4, scoped, tag = 'scoped memory for unrolled_blackbox_optimizer.1']
    #allocation6 [shape = 's32[1]{0}', space=sflag, size = 0x4, scoped, tag = 'scoped memory for unrolled_blackbox_optimizer.1']
    #allocation7 [shape = 'u8[512]{0}', space=vmem, size = 0x400, scoped, tag = 'output window, operand 0, single buffered']
    #allocation8 [shape = 'u8[512]{0}', space=smem, size = 0x200, scoped, tag = 'output window, operand 1, single buffered']
    #allocation9 [shape = 'u8[512]{0}', space=smem, size = 0x200, scoped, tag = 'output window, operand 2, single buffered']
    #allocation10 [shape = 's32[1]{0}', space=sflag, size = 0x4, scoped, tag = 'scoped memory for unrolled_blackbox_optimizer.1']
    %21 = vsyncpa [#allocation6], 0
    %22 = vsyncpa [#allocation4], 0
    %23 = vsyncpa [#allocation5], 0
    %24 = vsyncpa [#allocation10], 0
    // Predicated region
    $region2: #{unrolled_blackbox_optimizer.1} parent=1 // pred_check
      _
    $region3: #{unrolled_blackbox_optimizer.1} parent=1 // pred_check_branch
      %26 = sbr.rel (0) target = $region5
    $region4: #{unrolled_blackbox_optimizer.1} parent=1 // pred_region
      %s28 = ssub.s32 64, 64
      %29 = vsyncadd [#allocation6], %s28
      %s31 = sshll.u32 %s0, 4
      %s32 = int_to_ptr.vmem [resolvable:$true] %s31
      %34 = dma.vmem_to_smem %s32, 64, [#allocation3], [#allocation6]
    $region5: #{unrolled_blackbox_optimizer.1} parent=1 // pred_fallthru
      _
    // Predicated region
    $region6: #{unrolled_blackbox_optimizer.1} parent=1 // pred_check
      _
    $region7: #{unrolled_blackbox_optimizer.1} parent=1 // pred_check_branch
      %36 = sbr.rel (0) target = $region9
    $region8: #{unrolled_blackbox_optimizer.1} parent=1 // pred_region
      _
    $region9: #{unrolled_blackbox_optimizer.1} parent=1 // pred_fallthru
      _
    // Predicated region
    $region10: #{unrolled_blackbox_optimizer.1} parent=1 // pred_check
      _
    $region11: #{unrolled_blackbox_optimizer.1} parent=1 // pred_check_branch
      %38 = sbr.rel (0) target = $region13
    $region12: #{unrolled_blackbox_optimizer.1} parent=1 // pred_region
      _
    $region13: #{unrolled_blackbox_optimizer.1} parent=1 // pred_fallthru
      _
    // Predicated region
    $region14: #{unrolled_blackbox_optimizer.1} parent=1 // pred_check
      _
    $region15: #{unrolled_blackbox_optimizer.1} parent=1 // pred_check_branch
      %40 = sbr.rel (0) target = $region17
    $region16: #{unrolled_blackbox_optimizer.1} parent=1 // pred_region
      _
    $region17: #{unrolled_blackbox_optimizer.1} parent=1 // pred_fallthru
      _
    // Predicated region
    $region18: #{unrolled_blackbox_optimizer.1} parent=1 // pred_check
      _
    $region19: #{unrolled_blackbox_optimizer.1} parent=1 // pred_check_branch
      %42 = sbr.rel (0) target = $region21
    $region20: #{unrolled_blackbox_optimizer.1} parent=1 // pred_region
      _
    $region21: #{unrolled_blackbox_optimizer.1} parent=1 // pred_fallthru
      _
    // Predicated region
    $region22: #{unrolled_blackbox_optimizer.1} parent=1 // pred_check
      _
    $region23: #{unrolled_blackbox_optimizer.1} parent=1 // pred_check_branch
      %44 = sbr.rel (0) target = $region25
    $region24: #{unrolled_blackbox_optimizer.1} parent=1 // pred_region
      _
    $region25: #{unrolled_blackbox_optimizer.1} parent=1 // pred_fallthru
      _
    // Predicated region
    $region26: #{unrolled_blackbox_optimizer.1} parent=1 // pred_check
      _
    $region27: #{unrolled_blackbox_optimizer.1} parent=1 // pred_check_branch
      %46 = sbr.rel (0) target = $region29
    $region28: #{unrolled_blackbox_optimizer.1} parent=1 // pred_region
      _
    $region29: #{unrolled_blackbox_optimizer.1} parent=1 // pred_fallthru
      _
    // Predicated region
    $region30: #{unrolled_blackbox_optimizer.1} parent=1 // pred_check
      _
    $region31: #{unrolled_blackbox_optimizer.1} parent=1 // pred_check_branch
      %48 = sbr.rel (0) target = $region33
    $region32: #{unrolled_blackbox_optimizer.1} parent=1 // pred_region
      _
    $region33: #{unrolled_blackbox_optimizer.1} parent=1 // pred_fallthru
      _
    // Predicated region
    $region34: #{unrolled_blackbox_optimizer.1} parent=1 // pred_check
      _
    $region35: #{unrolled_blackbox_optimizer.1} parent=1 // pred_check_branch
      %50 = sbr.rel (0) target = $region37
    $region36: #{unrolled_blackbox_optimizer.1} parent=1 // pred_region
      _
    $region37: #{unrolled_blackbox_optimizer.1} parent=1 // pred_fallthru
      _
    // Predicated region
    $region38: #{unrolled_blackbox_optimizer.1} parent=1 // pred_check
      _
    $region39: #{unrolled_blackbox_optimizer.1} parent=1 // pred_check_branch
      %52 = sbr.rel (0) target = $region41
    $region40: #{unrolled_blackbox_optimizer.1} parent=1 // pred_region
      _
    $region41: #{unrolled_blackbox_optimizer.1} parent=1 // pred_fallthru
      _
    // Predicated region
    $region42: #{unrolled_blackbox_optimizer.1} parent=1 // pred_check
      _
    $region43: #{unrolled_blackbox_optimizer.1} parent=1 // pred_check_branch
      %54 = sbr.rel (0) target = $region45
    $region44: #{unrolled_blackbox_optimizer.1} parent=1 // pred_region
      _
    $region45: #{unrolled_blackbox_optimizer.1} parent=1 // pred_fallthru
      _
    // Predicated region
    $region46: #{unrolled_blackbox_optimizer.1} parent=1 // pred_check
      _
    $region47: #{unrolled_blackbox_optimizer.1} parent=1 // pred_check_branch
      %56 = sbr.rel (0) target = $region49
    $region48: #{unrolled_blackbox_optimizer.1} parent=1 // pred_region
      _
    $region49: #{unrolled_blackbox_optimizer.1} parent=1 // pred_fallthru
      _
    // Predicated region
    $region50: #{unrolled_blackbox_optimizer.1} parent=1 // pred_check
      _
    $region51: #{unrolled_blackbox_optimizer.1} parent=1 // pred_check_branch
      %58 = sbr.rel (0) target = $region53
    $region52: #{unrolled_blackbox_optimizer.1} parent=1 // pred_region
      %59 = dma.done [#allocation6], 64
    $region53: #{unrolled_blackbox_optimizer.1} parent=1 // pred_fallthru
      _
    %60 = sfence
    %s61 = sld [smem:[#allocation3]]
    %s62 = smul.u32 %s61, 8
    %s63 = scalar_lea.vmem %s1, %s62
    %v64 = vld [vmem:[%s63] sm:$0xff]
    %s65 = scalar_lea.vmem %s2, %s62
    %v66 = vld [vmem:[%s65] sm:$0xff]
    %s67 = sld [smem:[#allocation3 + $0x1]]
    %s68 = smul.u32 %s67, 8
    %s69 = scalar_lea.vmem %s1, %s68
    %v70 = vld [vmem:[%s69] sm:$0xff]
    %s71 = scalar_lea.vmem %s2, %s68
    %v72 = vld [vmem:[%s71] sm:$0xff]
    %s73 = sld [smem:[#allocation3 + $0x2]]
    %s74 = smul.u32 %s73, 8
    %s75 = scalar_lea.vmem %s1, %s74
    %v76 = vld [vmem:[%s75] sm:$0xff]
    %s77 = scalar_lea.vmem %s2, %s74
    %v78 = vld [vmem:[%s77] sm:$0xff]
    %80 = vrot.lane.b32.xlu0 %v70, 16
    %v81 = vpop.permute.xlu0 %80
    %vm83 = vcmask 130048
    %v84 = vsel %vm83, %v64, %v81
    %s85 = sld [smem:[#allocation3 + $0x80]]
    %s86 = smul.u32 %s85, 8
    %s87 = scalar_lea.vmem %s1, %s86
    %v88 = vld [vmem:[%s87] sm:$0xff]
    %s89 = scalar_lea.vmem %s2, %s86
    %v90 = vld [vmem:[%s89] sm:$0xff]
    %s91 = sld [smem:[#allocation3 + $0x81]]
    %s92 = smul.u32 %s91, 8
    %s93 = scalar_lea.vmem %s1, %s92
    %v94 = vld [vmem:[%s93] sm:$0xff]
    %s95 = scalar_lea.vmem %s2, %s92
    %v96 = vld [vmem:[%s95] sm:$0xff]
    %s97 = sld [smem:[#allocation3 + $0x82]]
    %s98 = smul.u32 %s97, 8
    %s99 = scalar_lea.vmem %s1, %s98
    %v100 = vld [vmem:[%s99] sm:$0xff]
    %s101 = scalar_lea.vmem %s2, %s98
    %v102 = vld [vmem:[%s101] sm:$0xff]
    %104 = vrot.lane.b32.xlu0 %v94, 16
    %v105 = vpop.permute.xlu0 %104
    %v107 = vsel %vm83, %v88, %v105
    %s108 = sld [smem:[#allocation3 + $0x100]]
    %s109 = smul.u32 %s108, 8
    %s110 = scalar_lea.vmem %s1, %s109
    %v111 = vld [vmem:[%s110] sm:$0xff]
    %s112 = scalar_lea.vmem %s2, %s109
    %v113 = vld [vmem:[%s112] sm:$0xff]
    %s114 = sld [smem:[#allocation3 + $0x101]]
    %s115 = smul.u32 %s114, 8
    %s116 = scalar_lea.vmem %s1, %s115
    %v117 = vld [vmem:[%s116] sm:$0xff]
    %s118 = scalar_lea.vmem %s2, %s115
    %v119 = vld [vmem:[%s118] sm:$0xff]
    %s120 = sld [smem:[#allocation3 + $0x102]]
    %s121 = smul.u32 %s120, 8
    %s122 = scalar_lea.vmem %s1, %s121
    %v123 = vld [vmem:[%s122] sm:$0xff]
    %s124 = scalar_lea.vmem %s2, %s121
    %v125 = vld [vmem:[%s124] sm:$0xff]
    %127 = vrot.lane.b32.xlu0 %v117, 16
    %v128 = vpop.permute.xlu0 %127
    %v130 = vsel %vm83, %v111, %v128
    %s131 = sld [smem:[#allocation3 + $0x180]]
    %s132 = smul.u32 %s131, 8
    %s133 = scalar_lea.vmem %s1, %s132
    %v134 = vld [vmem:[%s133] sm:$0xff]
    %s135 = scalar_lea.vmem %s2, %s132
    %v136 = vld [vmem:[%s135] sm:$0xff]
    %s137 = sld [smem:[#allocation3 + $0x181]]
    %s138 = smul.u32 %s137, 8
    %s139 = scalar_lea.vmem %s1, %s138
    %v140 = vld [vmem:[%s139] sm:$0xff]
    %s141 = scalar_lea.vmem %s2, %s138
    %v142 = vld [vmem:[%s141] sm:$0xff]
    %s143 = sld [smem:[#allocation3 + $0x182]]
    %s144 = smul.u32 %s143, 8
    %s145 = scalar_lea.vmem %s1, %s144
    %v146 = vld [vmem:[%s145] sm:$0xff]
    %s147 = scalar_lea.vmem %s2, %s144
    %v148 = vld [vmem:[%s147] sm:$0xff]
    %150 = vrot.lane.b32.xlu0 %v140, 16
    %v151 = vpop.permute.xlu0 %150
    %v153 = vsel %vm83, %v134, %v151
    %v154 = vld [vmem:[%s4] sm:$0xff]
    %v155 = vld [vmem:[%s4 + $0x8] sm:$0xff]
    %v156 = vld [vmem:[%s4 + $0x10] sm:$0xff]
    %v157 = vld [vmem:[%s4 + $0x18] sm:$0xff]
    %vm158 = vcmask 261120
    %v160 = vsel %vm158, %v84, 0
    %v163 = vsel %vm158, %v107, 0
    %v166 = vsel %vm158, %v130, 0
    %v169 = vsel %vm158, %v153, 0
    %171 = vmatprep.subr.mxu0 0.0
    %172 = vmatpush1.msra.mxu0 %v154
    %173 = vmatprep.subr.mxu0 0.0
    %174 = vmatpush1.msra.mxu0 %v155
    %175 = vmatprep.subr.mxu0 0.0
    %176 = vmatpush1.msra.mxu0 %v156
    %177 = vmatprep.subr.mxu0 0.0
    %178 = vmatpush1.msra.mxu0 %v157
    %179 = vmatprep.subr.mxu0 0.0
    %180 = vmatpush1.msra.mxu0 0.0
    %181 = vmatprep.subr.mxu0 0.0
    %182 = vmatpush1.msra.mxu0 0.0
    %183 = vmatprep.subr.mxu0 0.0
    %184 = vmatpush1.msra.mxu0 0.0
    %185 = vmatprep.subr.mxu0 0.0
    %186 = vmatpush1.msra.mxu0 0.0
    %187 = vmatprep.subr.mxu0 0.0
    %188 = vmatpush1.msra.mxu0 0.0
    %189 = vmatprep.subr.mxu0 0.0
    %190 = vmatpush1.msra.mxu0 0.0
    %191 = vmatprep.subr.mxu0 0.0
    %192 = vmatpush1.msra.mxu0 0.0
    %193 = vmatprep.subr.mxu0 0.0
    %194 = vmatpush1.msra.mxu0 0.0
    %195 = vmatprep.subr.mxu0 0.0
    %196 = vmatpush1.msra.mxu0 0.0
    %197 = vmatprep.subr.mxu0 0.0
    %198 = vmatpush1.msra.mxu0 0.0
    %199 = vmatprep.subr.mxu0 0.0
    %200 = vmatpush1.msra.mxu0 0.0
    %201 = vmatprep.subr.mxu0 0.0
    %202 = vmatpush1.msra.mxu0 0.0
    %203 = vmatprep.subr.mxu0 0.0
    %204 = vmatpush1.msra.mxu0 0.0
    %205 = vmatprep.subr.mxu0 0.0
    %206 = vmatpush1.msra.mxu0 0.0
    %207 = vmatprep.subr.mxu0 0.0
    %208 = vmatpush1.msra.mxu0 0.0
    %209 = vmatprep.subr.mxu0 0.0
    %210 = vmatpush1.msra.mxu0 0.0
    %211 = vmatprep.subr.mxu0 0.0
    %212 = vmatpush1.msra.mxu0 0.0
    %213 = vmatprep.subr.mxu0 0.0
    %214 = vmatpush1.msra.mxu0 0.0
    %215 = vmatprep.subr.mxu0 0.0
    %216 = vmatpush1.msra.mxu0 0.0
    %217 = vmatprep.subr.mxu0 0.0
    %218 = vmatpush1.msra.mxu0 0.0
    %219 = vmatprep.subr.mxu0 0.0
    %220 = vmatpush1.msra.mxu0 0.0
    %221 = vmatprep.subr.mxu0 0.0
    %222 = vmatpush1.msra.mxu0 0.0
    %223 = vmatprep.subr.mxu0 0.0
    %224 = vmatpush1.msra.mxu0 0.0
    %225 = vmatprep.subr.mxu0 0.0
    %226 = vmatpush1.msra.mxu0 0.0
    %227 = vmatprep.subr.mxu0 0.0
    %228 = vmatpush1.msra.mxu0 0.0
    %229 = vmatprep.subr.mxu0 0.0
    %230 = vmatpush1.msra.mxu0 0.0
    %231 = vmatprep.subr.mxu0 0.0
    %232 = vmatpush1.msra.mxu0 0.0
    %233 = vmatprep.subr.mxu0 0.0
    %234 = vmatpush1.msra.mxu0 0.0
    %235 = vmatprep.mubr.f32.mxu0 0.0
    %236 = vmatmul.mubr.f32.gmra.mrb[0].mxu0 %v160
    %v237 = vpop.f32.mrb[0].mxu0
    %v238 = vadd.f32 0.0, %v237
    %v239 = vpop.f32.mrb[0].mxu0
    %240 = vmatprep.mubr.f32.mxu0 0.0
    %241 = vmatmul.mubr.f32.gmra.mrb[0].mxu0 %v163
    %v242 = vpop.f32.mrb[0].mxu0
    %v243 = vadd.f32 0.0, %v242
    %v244 = vpop.f32.mrb[0].mxu0
    %245 = vmatprep.mubr.f32.mxu0 0.0
    %246 = vmatmul.mubr.f32.gmra.mrb[0].mxu0 %v166
    %v247 = vpop.f32.mrb[0].mxu0
    %v248 = vadd.f32 0.0, %v247
    %v249 = vpop.f32.mrb[0].mxu0
    %250 = vmatprep.mubr.f32.mxu0 0.0
    %251 = vmatmul.mubr.f32.gmra.mrb[0].mxu0 %v169
    %v252 = vpop.f32.mrb[0].mxu0
    %v253 = vadd.f32 0.0, %v252
    %v254 = vpop.f32.mrb[0].mxu0
    %255 = vdwg.mxu0
    %v256 = vld [vmem:[%s7] sm:$0x1]
    %v257 = vld [vmem:[%s8] sm:$0x1]
    %v258 = vld [vmem:[%s9] sm:$0x1]
    %v259 = vld [vmem:[%s10] sm:$0x1]
    %s260 = sld [smem:[#allocation2]]
    %v261 = vld [vmem:[%s5] sm:$0xff]
    %v262 = vld [vmem:[%s5 + $0x8] sm:$0xff]
    %v263 = vld [vmem:[%s6] sm:$0xff]
    %v264 = vld [vmem:[%s6 + $0x8] sm:$0xff]
    %v265 = vld [vmem:[%s6 + $0x10] sm:$0xff]
    %v266 = vld [vmem:[%s6 + $0x18] sm:$0xff]
    %268 = vset.pattern.permute.xlu0 0
    %269 = vperm.xlu0 %268, %v66
    %v270 = vpop.permute.xlu0 %269
    %v273 = vlaneseq
    %v274 = vshrl.u32 %v273, 7
    %v275 = vsub.s32 0, %v274
    %v276 = vrot.slane %v256, %v275
    %v278 = vmul.f32 %v270, %v276
    %v279 = vadd.f32 %v238, %v278
    %281 = vset.pattern.permute.xlu0 0
    %282 = vperm.xlu0 %281, %v72
    %v283 = vpop.permute.xlu0 %282
    %v286 = vlaneseq
    %v287 = vshrl.u32 %v286, 7
    %v288 = vsub.s32 0, %v287
    %v289 = vrot.slane %v257, %v288
    %v291 = vmul.f32 %v283, %v289
    %v292 = vadd.f32 %v279, %v291
    %v294 = vlaneseq
    %v295 = vshrl.u32 %v294, 7
    %v296 = vsub.s32 0, %v295
    %v297 = vrot.slane %v258, %v296
    %v299 = vadd.f32 %v292, %v297
    %301 = vset.pattern.permute.xlu0 0
    %302 = vperm.xlu0 %301, %v90
    %v303 = vpop.permute.xlu0 %302
    %v305 = vmul.f32 %v303, %v276
    %v306 = vadd.f32 %v243, %v305
    %308 = vset.pattern.permute.xlu0 0
    %309 = vperm.xlu0 %308, %v96
    %v310 = vpop.permute.xlu0 %309
    %v312 = vmul.f32 %v310, %v289
    %v313 = vadd.f32 %v306, %v312
    %v314 = vadd.f32 %v313, %v297
    %316 = vset.pattern.permute.xlu0 0
    %317 = vperm.xlu0 %316, %v113
    %v318 = vpop.permute.xlu0 %317
    %v320 = vmul.f32 %v318, %v276
    %v321 = vadd.f32 %v248, %v320
    %323 = vset.pattern.permute.xlu0 0
    %324 = vperm.xlu0 %323, %v119
    %v325 = vpop.permute.xlu0 %324
    %v327 = vmul.f32 %v325, %v289
    %v328 = vadd.f32 %v321, %v327
    %v329 = vadd.f32 %v328, %v297
    %331 = vset.pattern.permute.xlu0 0
    %332 = vperm.xlu0 %331, %v136
    %v333 = vpop.permute.xlu0 %332
    %v335 = vmul.f32 %v333, %v276
    %v336 = vadd.f32 %v253, %v335
    %338 = vset.pattern.permute.xlu0 0
    %339 = vperm.xlu0 %338, %v142
    %v340 = vpop.permute.xlu0 %339
    %v342 = vmul.f32 %v340, %v289
    %v343 = vadd.f32 %v336, %v342
    %v344 = vadd.f32 %v343, %v297
    %v345 = vld [vmem:[%s3] sm:$0x1]
    %v347 = vsel %vm83, %v345, 0
    %349 = vmatprep.subr.mxu0 0.0
    %350 = vmatpush1.msra.mxu0 %v261
    %351 = vmatprep.subr.mxu0 0.0
    %352 = vmatpush1.msra.mxu0 %v262
    %353 = vmatprep.subr.mxu0 0.0
    %354 = vmatpush1.msra.mxu0 0.0
    %355 = vmatprep.subr.mxu0 0.0
    %356 = vmatpush1.msra.mxu0 0.0
    %357 = vmatprep.subr.mxu0 0.0
    %358 = vmatpush1.msra.mxu0 0.0
    %359 = vmatprep.subr.mxu0 0.0
    %360 = vmatpush1.msra.mxu0 0.0
    %361 = vmatprep.subr.mxu0 0.0
    %362 = vmatpush1.msra.mxu0 0.0
    %363 = vmatprep.subr.mxu0 0.0
    %364 = vmatpush1.msra.mxu0 0.0
    %365 = vmatprep.subr.mxu0 0.0
    %366 = vmatpush1.msra.mxu0 0.0
    %367 = vmatprep.subr.mxu0 0.0
    %368 = vmatpush1.msra.mxu0 0.0
    %369 = vmatprep.subr.mxu0 0.0
    %370 = vmatpush1.msra.mxu0 0.0
    %371 = vmatprep.subr.mxu0 0.0
    %372 = vmatpush1.msra.mxu0 0.0
    %373 = vmatprep.subr.mxu0 0.0
    %374 = vmatpush1.msra.mxu0 0.0
    %375 = vmatprep.subr.mxu0 0.0
    %376 = vmatpush1.msra.mxu0 0.0
    %377 = vmatprep.subr.mxu0 0.0
    %378 = vmatpush1.msra.mxu0 0.0
    %379 = vmatprep.subr.mxu0 0.0
    %380 = vmatpush1.msra.mxu0 0.0
    %381 = vmatprep.subr.mxu0 0.0
    %382 = vmatpush1.msra.mxu0 0.0
    %383 = vmatprep.subr.mxu0 0.0
    %384 = vmatpush1.msra.mxu0 0.0
    %385 = vmatprep.subr.mxu0 0.0
    %386 = vmatpush1.msra.mxu0 0.0
    %387 = vmatprep.subr.mxu0 0.0
    %388 = vmatpush1.msra.mxu0 0.0
    %389 = vmatprep.subr.mxu0 0.0
    %390 = vmatpush1.msra.mxu0 0.0
    %391 = vmatprep.subr.mxu0 0.0
    %392 = vmatpush1.msra.mxu0 0.0
    %393 = vmatprep.subr.mxu0 0.0
    %394 = vmatpush1.msra.mxu0 0.0
    %395 = vmatprep.subr.mxu0 0.0
    %396 = vmatpush1.msra.mxu0 0.0
    %397 = vmatprep.subr.mxu0 0.0
    %398 = vmatpush1.msra.mxu0 0.0
    %399 = vmatprep.subr.mxu0 0.0
    %400 = vmatpush1.msra.mxu0 0.0
    %401 = vmatprep.subr.mxu0 0.0
    %402 = vmatpush1.msra.mxu0 0.0
    %403 = vmatprep.subr.mxu0 0.0
    %404 = vmatpush1.msra.mxu0 0.0
    %405 = vmatprep.subr.mxu0 0.0
    %406 = vmatpush1.msra.mxu0 0.0
    %407 = vmatprep.subr.mxu0 0.0
    %408 = vmatpush1.msra.mxu0 0.0
    %409 = vmatprep.subr.mxu0 0.0
    %410 = vmatpush1.msra.mxu0 0.0
    %411 = vmatprep.subr.mxu0 0.0
    %412 = vmatpush1.msra.mxu0 0.0
    %413 = vmatprep.mubr.f32.mxu0 0.0
    %414 = vmatmul.mubr.f32.gmra.mrb[0].mxu0 %v347
    %v415 = vpop.f32.mrb[0].mxu0
    %v416 = vadd.f32 0.0, %v415
    %v417 = vpop.f32.mrb[0].mxu0
    %418 = vdwg.mxu0
    %v419 = vlaneseq
    %v420 = vshrl.u32 %v419, 7
    %v421 = vsub.s32 0, %v420
    %v422 = vrot.slane %v416, %v421
    %v423 = vadd.f32 %v299, %v422
    %v424 = vmax.f32 %v423, 0.0
    %v426 = vlaneseq
    %v427 = vshrl.u32 %v426, 7
    %v428 = vsub.s32 0, %v427
    %v429 = vrot.slane %v259, %v428
    %v431 = vmul.f32 %v424, %v429
    %v432 = vsel %vm158, %v431, 0.0
    %433 = vadd.xlane.f32.xlu0 %v432
    %v434 = vpop.xlane.xlu0 %433
    %v435 = vrot.slane %v434, 4
    %v436 = vadd.f32 %v434, %v435
    %v437 = vrot.slane %v436, 2
    %v438 = vadd.f32 %v436, %v437
    %v439 = vrot.slane %v438, 1
    %v440 = vadd.f32 %v438, %v439
    %s441 = vtos %v440
    %v442 = vrcp.pop 8.0
    %s443 = vtos %v442
    %s444 = smul.f32 %s441, %s443
    %s445 = sadd.f32 %s444, %s260
    %s446 = sxor.u32 %s445, 2147483648
    %v447 = vstv %s446
    %v448 = vmul.f32 %v447, 1.442695
    %v449 = vpow.pop %v448
    %s450 = vtos %v449
    %s451 = sadd.f32 %s450, 1.0
    %v452 = vstv %s451
    %v453 = vrcp.pop %v452
    %s454 = vtos %v453
    %v455 = vstv %s454
    %v456 = vmul.f32 %v455, %v64
    %s457 = ssub.f32 1.0, %s454
    %v458 = vstv %s457
    %v459 = vmul.f32 %v458, %v70
    %v460 = vadd.f32 %v456, %v459
    %v461 = vlaneseq
    %v462 = vshrl.u32 %v461, 7
    %v463 = vsub.s32 0, %v462
    %v464 = vrot.slane %v345, %v463
    %v466 = vmul.f32 %v460, %v464
    %v467 = vsel %vm83, %v466, 0.0
    %468 = vadd.xlane.f32.xlu0 %v467
    %v469 = vpop.xlane.xlu0 %468
    %v470 = vsub.f32 %v469, %v66
    %v471 = vmul.f32 %v470, %v470
    %vm472 = vcmask 7168
    %v473 = vsel %vm472, %v471, 0.0
    %474 = vadd.xlane.f32.xlu0 %v473
    %v475 = vpop.xlane.xlu0 %474
    %v476 = vrot.slane %v475, 4
    %v477 = vadd.f32 %v475, %v476
    %v478 = vrot.slane %v477, 2
    %v479 = vadd.f32 %v477, %v478
    %v480 = vrot.slane %v479, 1
    %v481 = vadd.f32 %v479, %v480
    %s482 = vtos %v481
    %v483 = vrcp.pop 8.0
    %s484 = vtos %v483
    %s485 = smul.f32 %s482, %s484
    %v486 = vsub.f32 %v469, %v72
    %v487 = vmul.f32 %v486, %v486
    %v488 = vsel %vm472, %v487, 0.0
    %489 = vadd.xlane.f32.xlu0 %v488
    %v490 = vpop.xlane.xlu0 %489
    %v491 = vrot.slane %v490, 4
    %v492 = vadd.f32 %v490, %v491
    %v493 = vrot.slane %v492, 2
    %v494 = vadd.f32 %v492, %v493
    %v495 = vrot.slane %v494, 1
    %v496 = vadd.f32 %v494, %v495
    %s497 = vtos %v496
    %v498 = vrcp.pop 8.0
    %s499 = vtos %v498
    %s500 = smul.f32 %s497, %s499
    %s501 = smul.f32 %s454, %s485
    %s502 = smul.f32 %s457, %s500
    %s503 = sadd.f32 %s501, %s502
    %s504 = scalar_lea.smem [#allocation9], 0
    %505 = sst [smem:[%s504]] %s503
    %v506 = vmul.f32 %v455, %v470
    %v507 = vmul.f32 %v458, %v486
    %v508 = vadd.f32 %v506, %v507
    %v509 = vmul.f32 %v508, 0.25
    %511 = vset.pattern.permute.xlu0 0
    %512 = vperm.xlu0 %511, %v509
    %v513 = vpop.permute.xlu0 %512
    %v515 = vmul.f32 %v513, %v460
    %v516 = vsel %vm83, %v515, 0.0
    %v517 = vrot.slane %v516, 4
    %v518 = vadd.f32 %v516, %v517
    %v519 = vrot.slane %v518, 2
    %v520 = vadd.f32 %v518, %v519
    %v521 = vrot.slane %v520, 1
    %v522 = vadd.f32 %v520, %v521
    %vm523 = vcmp.gt.f32.partialorder %v424, 0.0
    %v524 = vsel %vm523, 1, 0
    %v525 = vcvt.s32.f32 %v524
    %v526 = vsel %vm158, %v525, 0.0
    %v527 = vrot.slane %v526, 4
    %v528 = vadd.f32 %v526, %v527
    %v529 = vrot.slane %v528, 2
    %v530 = vadd.f32 %v528, %v529
    %v531 = vrot.slane %v530, 1
    %v532 = vadd.f32 %v530, %v531
    %v533 = vmul.f32 %v532, %v259
    %v535 = vsel %vm158, %v533, 0
    %537 = vmatprep.subr.mxu0 0.0
    %538 = vmatpush1.msra.mxu0 %v263
    %539 = vmatprep.subr.mxu0 0.0
    %540 = vmatpush1.msra.mxu0 %v264
    %541 = vmatprep.subr.mxu0 0.0
    %542 = vmatpush1.msra.mxu0 %v265
    %543 = vmatprep.subr.mxu0 0.0
    %544 = vmatpush1.msra.mxu0 %v266
    %545 = vmatprep.subr.mxu0 0.0
    %546 = vmatpush1.msra.mxu0 0.0
    %547 = vmatprep.subr.mxu0 0.0
    %548 = vmatpush1.msra.mxu0 0.0
    %549 = vmatprep.subr.mxu0 0.0
    %550 = vmatpush1.msra.mxu0 0.0
    %551 = vmatprep.subr.mxu0 0.0
    %552 = vmatpush1.msra.mxu0 0.0
    %553 = vmatprep.subr.mxu0 0.0
    %554 = vmatpush1.msra.mxu0 0.0
    %555 = vmatprep.subr.mxu0 0.0
    %556 = vmatpush1.msra.mxu0 0.0
    %557 = vmatprep.subr.mxu0 0.0
    %558 = vmatpush1.msra.mxu0 0.0
    %559 = vmatprep.subr.mxu0 0.0
    %560 = vmatpush1.msra.mxu0 0.0
    %561 = vmatprep.subr.mxu0 0.0
    %562 = vmatpush1.msra.mxu0 0.0
    %563 = vmatprep.subr.mxu0 0.0
    %564 = vmatpush1.msra.mxu0 0.0
    %565 = vmatprep.subr.mxu0 0.0
    %566 = vmatpush1.msra.mxu0 0.0
    %567 = vmatprep.subr.mxu0 0.0
    %568 = vmatpush1.msra.mxu0 0.0
    %569 = vmatprep.subr.mxu0 0.0
    %570 = vmatpush1.msra.mxu0 0.0
    %571 = vmatprep.subr.mxu0 0.0
    %572 = vmatpush1.msra.mxu0 0.0
    %573 = vmatprep.subr.mxu0 0.0
    %574 = vmatpush1.msra.mxu0 0.0
    %575 = vmatprep.subr.mxu0 0.0
    %576 = vmatpush1.msra.mxu0 0.0
    %577 = vmatprep.subr.mxu0 0.0
    %578 = vmatpush1.msra.mxu0 0.0
    %579 = vmatprep.subr.mxu0 0.0
    %580 = vmatpush1.msra.mxu0 0.0
    %581 = vmatprep.subr.mxu0 0.0
    %582 = vmatpush1.msra.mxu0 0.0
    %583 = vmatprep.subr.mxu0 0.0
    %584 = vmatpush1.msra.mxu0 0.0
    %585 = vmatprep.subr.mxu0 0.0
    %586 = vmatpush1.msra.mxu0 0.0
    %587 = vmatprep.subr.mxu0 0.0
    %588 = vmatpush1.msra.mxu0 0.0
    %589 = vmatprep.subr.mxu0 0.0
    %590 = vmatpush1.msra.mxu0 0.0
    %591 = vmatprep.subr.mxu0 0.0
    %592 = vmatpush1.msra.mxu0 0.0
    %593 = vmatprep.subr.mxu0 0.0
    %594 = vmatpush1.msra.mxu0 0.0
    %595 = vmatprep.subr.mxu0 0.0
    %596 = vmatpush1.msra.mxu0 0.0
    %597 = vmatprep.subr.mxu0 0.0
    %598 = vmatpush1.msra.mxu0 0.0
    %599 = vmatprep.subr.mxu0 0.0
    %600 = vmatpush1.msra.mxu0 0.0
    %601 = vmatprep.mubr.f32.mxu0 0.0
    %602 = vmatmul.mubr.f32.gmra.mrb[0].mxu0 %v535
    %v603 = vpop.f32.mrb[0].mxu0
    %v604 = vadd.f32 0.0, %v603
    %v605 = vpop.f32.mrb[0].mxu0
    %606 = vdwg.mxu0
    %s607 = smul.f32 %s454, %s457
    %v608 = vrcp.pop 8.0
    %s609 = vtos %v608
    %s610 = smul.f32 %s607, %s609
    %v611 = vstv %s610
    %v612 = vmul.f32 %v611, %v604
    %v613 = vsub.f32 %v64, %v70
    %v614 = vmul.f32 %v613, %v464
    %v615 = vsel %vm83, %v614, 0.0
    %616 = vadd.xlane.f32.xlu0 %v615
    %v617 = vpop.xlane.xlu0 %616
    %v618 = vmul.f32 %v509, %v617
    %v619 = vsel %vm472, %v618, 0.0
    %620 = vadd.xlane.f32.xlu0 %v619
    %v621 = vpop.xlane.xlu0 %620
    %v622 = vrot.slane %v621, 4
    %v623 = vadd.f32 %v621, %v622
    %v624 = vrot.slane %v623, 2
    %v625 = vadd.f32 %v623, %v624
    %v626 = vrot.slane %v625, 1
    %v627 = vadd.f32 %v625, %v626
    %s628 = vtos %v627
    %s629 = ssub.f32 %s485, %s500
    %s630 = sadd.f32 %s628, %s629
    %v631 = vstv %s630
    %v632 = vmul.f32 %v631, %v612
    %v633 = vadd.f32 %v522, %v632
    %v634 = vmul.f32 %v633, 0.001
    %v635 = vsub.f32 %v345, %v634
    %v637 = vlaneseq
    %v638 = vshrl.u32 %v637, 7
    %v639 = vsub.s32 0, %v638
    %v640 = vrot.slane %v635, %v639
    %v642 = vmul.f32 %v76, %v640
    %v643 = vsel %vm83, %v642, 0.0
    %644 = vadd.xlane.f32.xlu0 %v643
    %v645 = vpop.xlane.xlu0 %644
    %v646 = vsub.f32 %v645, %v78
    %v647 = vmul.f32 %v646, %v646
    %v648 = vsel %vm472, %v647, 0.0
    %649 = vadd.xlane.f32.xlu0 %v648
    %v650 = vpop.xlane.xlu0 %649
    %v651 = vrot.slane %v650, 4
    %v652 = vadd.f32 %v650, %v651
    %v653 = vrot.slane %v652, 2
    %v654 = vadd.f32 %v652, %v653
    %v655 = vrot.slane %v654, 1
    %v656 = vadd.f32 %v654, %v655
    %s657 = vtos %v656
    %v658 = vrcp.pop 8.0
    %s659 = vtos %v658
    %s660 = smul.f32 %s657, %s659
    %s661 = sadd.f32 %s660, 0.0
    %v662 = vsel %vm83, %v635, 0
    %664 = vmatprep.subr.mxu0 0.0
    %665 = vmatpush1.msra.mxu0 %v261
    %666 = vmatprep.subr.mxu0 0.0
    %667 = vmatpush1.msra.mxu0 %v262
    %668 = vmatprep.subr.mxu0 0.0
    %669 = vmatpush1.msra.mxu0 0.0
    %670 = vmatprep.subr.mxu0 0.0
    %671 = vmatpush1.msra.mxu0 0.0
    %672 = vmatprep.subr.mxu0 0.0
    %673 = vmatpush1.msra.mxu0 0.0
    %674 = vmatprep.subr.mxu0 0.0
    %675 = vmatpush1.msra.mxu0 0.0
    %676 = vmatprep.subr.mxu0 0.0
    %677 = vmatpush1.msra.mxu0 0.0
    %678 = vmatprep.subr.mxu0 0.0
    %679 = vmatpush1.msra.mxu0 0.0
    %680 = vmatprep.subr.mxu0 0.0
    %681 = vmatpush1.msra.mxu0 0.0
    %682 = vmatprep.subr.mxu0 0.0
    %683 = vmatpush1.msra.mxu0 0.0
    %684 = vmatprep.subr.mxu0 0.0
    %685 = vmatpush1.msra.mxu0 0.0
    %686 = vmatprep.subr.mxu0 0.0
    %687 = vmatpush1.msra.mxu0 0.0
    %688 = vmatprep.subr.mxu0 0.0
    %689 = vmatpush1.msra.mxu0 0.0
    %690 = vmatprep.subr.mxu0 0.0
    %691 = vmatpush1.msra.mxu0 0.0
    %692 = vmatprep.subr.mxu0 0.0
    %693 = vmatpush1.msra.mxu0 0.0
    %694 = vmatprep.subr.mxu0 0.0
    %695 = vmatpush1.msra.mxu0 0.0
    %696 = vmatprep.subr.mxu0 0.0
    %697 = vmatpush1.msra.mxu0 0.0
    %698 = vmatprep.subr.mxu0 0.0
    %699 = vmatpush1.msra.mxu0 0.0
    %700 = vmatprep.subr.mxu0 0.0
    %701 = vmatpush1.msra.mxu0 0.0
    %702 = vmatprep.subr.mxu0 0.0
    %703 = vmatpush1.msra.mxu0 0.0
    %704 = vmatprep.subr.mxu0 0.0
    %705 = vmatpush1.msra.mxu0 0.0
    %706 = vmatprep.subr.mxu0 0.0
    %707 = vmatpush1.msra.mxu0 0.0
    %708 = vmatprep.subr.mxu0 0.0
    %709 = vmatpush1.msra.mxu0 0.0
    %710 = vmatprep.subr.mxu0 0.0
    %711 = vmatpush1.msra.mxu0 0.0
    %712 = vmatprep.subr.mxu0 0.0
    %713 = vmatpush1.msra.mxu0 0.0
    %714 = vmatprep.subr.mxu0 0.0
    %715 = vmatpush1.msra.mxu0 0.0
    %716 = vmatprep.subr.mxu0 0.0
    %717 = vmatpush1.msra.mxu0 0.0
    %718 = vmatprep.subr.mxu0 0.0
    %719 = vmatpush1.msra.mxu0 0.0
    %720 = vmatprep.subr.mxu0 0.0
    %721 = vmatpush1.msra.mxu0 0.0
    %722 = vmatprep.subr.mxu0 0.0
    %723 = vmatpush1.msra.mxu0 0.0
    %724 = vmatprep.subr.mxu0 0.0
    %725 = vmatpush1.msra.mxu0 0.0
    %726 = vmatprep.subr.mxu0 0.0
    %727 = vmatpush1.msra.mxu0 0.0
    %728 = vmatprep.mubr.f32.mxu0 0.0
    %729 = vmatmul.mubr.f32.gmra.mrb[0].mxu0 %v662
    %v730 = vpop.f32.mrb[0].mxu0
    %v731 = vadd.f32 0.0, %v730
    %v732 = vpop.f32.mrb[0].mxu0
    %733 = vdwg.mxu0
    %v734 = vlaneseq
    %v735 = vshrl.u32 %v734, 7
    %v736 = vsub.s32 0, %v735
    %v737 = vrot.slane %v731, %v736
    %v738 = vadd.f32 %v314, %v737
    %v739 = vmax.f32 %v738, 0.0
    %v740 = vmul.f32 %v739, %v429
    %v741 = vsel %vm158, %v740, 0.0
    %742 = vadd.xlane.f32.xlu0 %v741
    %v743 = vpop.xlane.xlu0 %742
    %v744 = vrot.slane %v743, 4
    %v745 = vadd.f32 %v743, %v744
    %v746 = vrot.slane %v745, 2
    %v747 = vadd.f32 %v745, %v746
    %v748 = vrot.slane %v747, 1
    %v749 = vadd.f32 %v747, %v748
    %s750 = vtos %v749
    %v751 = vrcp.pop 8.0
    %s752 = vtos %v751
    %s753 = smul.f32 %s750, %s752
    %s754 = sadd.f32 %s753, %s260
    %s755 = sxor.u32 %s754, 2147483648
    %v756 = vstv %s755
    %v757 = vmul.f32 %v756, 1.442695
    %v758 = vpow.pop %v757
    %s759 = vtos %v758
    %s760 = sadd.f32 %s759, 1.0
    %v761 = vstv %s760
    %v762 = vrcp.pop %v761
    %s763 = vtos %v762
    %v764 = vstv %s763
    %v765 = vmul.f32 %v764, %v88
    %s766 = ssub.f32 1.0, %s763
    %v767 = vstv %s766
    %v768 = vmul.f32 %v767, %v94
    %v769 = vadd.f32 %v765, %v768
    %v770 = vmul.f32 %v769, %v640
    %v771 = vsel %vm83, %v770, 0.0
    %772 = vadd.xlane.f32.xlu0 %v771
    %v773 = vpop.xlane.xlu0 %772
    %v774 = vsub.f32 %v773, %v90
    %v775 = vmul.f32 %v774, %v774
    %v776 = vsel %vm472, %v775, 0.0
    %777 = vadd.xlane.f32.xlu0 %v776
    %v778 = vpop.xlane.xlu0 %777
    %v779 = vrot.slane %v778, 4
    %v780 = vadd.f32 %v778, %v779
    %v781 = vrot.slane %v780, 2
    %v782 = vadd.f32 %v780, %v781
    %v783 = vrot.slane %v782, 1
    %v784 = vadd.f32 %v782, %v783
    %s785 = vtos %v784
    %v786 = vrcp.pop 8.0
    %s787 = vtos %v786
    %s788 = smul.f32 %s785, %s787
    %v789 = vsub.f32 %v773, %v96
    %v790 = vmul.f32 %v789, %v789
    %v791 = vsel %vm472, %v790, 0.0
    %792 = vadd.xlane.f32.xlu0 %v791
    %v793 = vpop.xlane.xlu0 %792
    %v794 = vrot.slane %v793, 4
    %v795 = vadd.f32 %v793, %v794
    %v796 = vrot.slane %v795, 2
    %v797 = vadd.f32 %v795, %v796
    %v798 = vrot.slane %v797, 1
    %v799 = vadd.f32 %v797, %v798
    %s800 = vtos %v799
    %v801 = vrcp.pop 8.0
    %s802 = vtos %v801
    %s803 = smul.f32 %s800, %s802
    %s804 = smul.f32 %s763, %s788
    %s805 = smul.f32 %s766, %s803
    %s806 = sadd.f32 %s804, %s805
    %s807 = scalar_lea.smem [#allocation9], 1
    %808 = sst [smem:[%s807]] %s806
    %v809 = vmul.f32 %v764, %v774
    %v810 = vmul.f32 %v767, %v789
    %v811 = vadd.f32 %v809, %v810
    %v812 = vmul.f32 %v811, 0.25
    %814 = vset.pattern.permute.xlu0 0
    %815 = vperm.xlu0 %814, %v812
    %v816 = vpop.permute.xlu0 %815
    %v818 = vmul.f32 %v816, %v769
    %v819 = vsel %vm83, %v818, 0.0
    %v820 = vrot.slane %v819, 4
    %v821 = vadd.f32 %v819, %v820
    %v822 = vrot.slane %v821, 2
    %v823 = vadd.f32 %v821, %v822
    %v824 = vrot.slane %v823, 1
    %v825 = vadd.f32 %v823, %v824
    %vm826 = vcmp.gt.f32.partialorder %v739, 0.0
    %v827 = vsel %vm826, 1, 0
    %v828 = vcvt.s32.f32 %v827
    %v829 = vsel %vm158, %v828, 0.0
    %v830 = vrot.slane %v829, 4
    %v831 = vadd.f32 %v829, %v830
    %v832 = vrot.slane %v831, 2
    %v833 = vadd.f32 %v831, %v832
    %v834 = vrot.slane %v833, 1
    %v835 = vadd.f32 %v833, %v834
    %v836 = vmul.f32 %v835, %v259
    %v838 = vsel %vm158, %v836, 0
    %840 = vmatprep.subr.mxu0 0.0
    %841 = vmatpush1.msra.mxu0 %v263
    %842 = vmatprep.subr.mxu0 0.0
    %843 = vmatpush1.msra.mxu0 %v264
    %844 = vmatprep.subr.mxu0 0.0
    %845 = vmatpush1.msra.mxu0 %v265
    %846 = vmatprep.subr.mxu0 0.0
    %847 = vmatpush1.msra.mxu0 %v266
    %848 = vmatprep.subr.mxu0 0.0
    %849 = vmatpush1.msra.mxu0 0.0
    %850 = vmatprep.subr.mxu0 0.0
    %851 = vmatpush1.msra.mxu0 0.0
    %852 = vmatprep.subr.mxu0 0.0
    %853 = vmatpush1.msra.mxu0 0.0
    %854 = vmatprep.subr.mxu0 0.0
    %855 = vmatpush1.msra.mxu0 0.0
    %856 = vmatprep.subr.mxu0 0.0
    %857 = vmatpush1.msra.mxu0 0.0
    %858 = vmatprep.subr.mxu0 0.0
    %859 = vmatpush1.msra.mxu0 0.0
    %860 = vmatprep.subr.mxu0 0.0
    %861 = vmatpush1.msra.mxu0 0.0
    %862 = vmatprep.subr.mxu0 0.0
    %863 = vmatpush1.msra.mxu0 0.0
    %864 = vmatprep.subr.mxu0 0.0
    %865 = vmatpush1.msra.mxu0 0.0
    %866 = vmatprep.subr.mxu0 0.0
    %867 = vmatpush1.msra.mxu0 0.0
    %868 = vmatprep.subr.mxu0 0.0
    %869 = vmatpush1.msra.mxu0 0.0
    %870 = vmatprep.subr.mxu0 0.0
    %871 = vmatpush1.msra.mxu0 0.0
    %872 = vmatprep.subr.mxu0 0.0
    %873 = vmatpush1.msra.mxu0 0.0
    %874 = vmatprep.subr.mxu0 0.0
    %875 = vmatpush1.msra.mxu0 0.0
    %876 = vmatprep.subr.mxu0 0.0
    %877 = vmatpush1.msra.mxu0 0.0
    %878 = vmatprep.subr.mxu0 0.0
    %879 = vmatpush1.msra.mxu0 0.0
    %880 = vmatprep.subr.mxu0 0.0
    %881 = vmatpush1.msra.mxu0 0.0
    %882 = vmatprep.subr.mxu0 0.0
    %883 = vmatpush1.msra.mxu0 0.0
    %884 = vmatprep.subr.mxu0 0.0
    %885 = vmatpush1.msra.mxu0 0.0
    %886 = vmatprep.subr.mxu0 0.0
    %887 = vmatpush1.msra.mxu0 0.0
    %888 = vmatprep.subr.mxu0 0.0
    %889 = vmatpush1.msra.mxu0 0.0
    %890 = vmatprep.subr.mxu0 0.0
    %891 = vmatpush1.msra.mxu0 0.0
    %892 = vmatprep.subr.mxu0 0.0
    %893 = vmatpush1.msra.mxu0 0.0
    %894 = vmatprep.subr.mxu0 0.0
    %895 = vmatpush1.msra.mxu0 0.0
    %896 = vmatprep.subr.mxu0 0.0
    %897 = vmatpush1.msra.mxu0 0.0
    %898 = vmatprep.subr.mxu0 0.0
    %899 = vmatpush1.msra.mxu0 0.0
    %900 = vmatprep.subr.mxu0 0.0
    %901 = vmatpush1.msra.mxu0 0.0
    %902 = vmatprep.subr.mxu0 0.0
    %903 = vmatpush1.msra.mxu0 0.0
    %904 = vmatprep.mubr.f32.mxu0 0.0
    %905 = vmatmul.mubr.f32.gmra.mrb[0].mxu0 %v838
    %v906 = vpop.f32.mrb[0].mxu0
    %v907 = vadd.f32 0.0, %v906
    %v908 = vpop.f32.mrb[0].mxu0
    %909 = vdwg.mxu0
    %s910 = smul.f32 %s763, %s766
    %v911 = vrcp.pop 8.0
    %s912 = vtos %v911
    %s913 = smul.f32 %s910, %s912
    %v914 = vstv %s913
    %v915 = vmul.f32 %v914, %v907
    %v916 = vsub.f32 %v88, %v94
    %v917 = vmul.f32 %v916, %v640
    %v918 = vsel %vm83, %v917, 0.0
    %919 = vadd.xlane.f32.xlu0 %v918
    %v920 = vpop.xlane.xlu0 %919
    %v921 = vmul.f32 %v812, %v920
    %v922 = vsel %vm472, %v921, 0.0
    %923 = vadd.xlane.f32.xlu0 %v922
    %v924 = vpop.xlane.xlu0 %923
    %v925 = vrot.slane %v924, 4
    %v926 = vadd.f32 %v924, %v925
    %v927 = vrot.slane %v926, 2
    %v928 = vadd.f32 %v926, %v927
    %v929 = vrot.slane %v928, 1
    %v930 = vadd.f32 %v928, %v929
    %s931 = vtos %v930
    %s932 = ssub.f32 %s788, %s803
    %s933 = sadd.f32 %s931, %s932
    %v934 = vstv %s933
    %v935 = vmul.f32 %v934, %v915
    %v936 = vadd.f32 %v825, %v935
    %v937 = vmul.f32 %v936, 0.001
    %v938 = vsub.f32 %v635, %v937
    %v940 = vlaneseq
    %v941 = vshrl.u32 %v940, 7
    %v942 = vsub.s32 0, %v941
    %v943 = vrot.slane %v938, %v942
    %v945 = vmul.f32 %v100, %v943
    %v946 = vsel %vm83, %v945, 0.0
    %947 = vadd.xlane.f32.xlu0 %v946
    %v948 = vpop.xlane.xlu0 %947
    %v949 = vsub.f32 %v948, %v102
    %v950 = vmul.f32 %v949, %v949
    %v951 = vsel %vm472, %v950, 0.0
    %952 = vadd.xlane.f32.xlu0 %v951
    %v953 = vpop.xlane.xlu0 %952
    %v954 = vrot.slane %v953, 4
    %v955 = vadd.f32 %v953, %v954
    %v956 = vrot.slane %v955, 2
    %v957 = vadd.f32 %v955, %v956
    %v958 = vrot.slane %v957, 1
    %v959 = vadd.f32 %v957, %v958
    %s960 = vtos %v959
    %v961 = vrcp.pop 8.0
    %s962 = vtos %v961
    %s963 = smul.f32 %s960, %s962
    %s964 = sadd.f32 %s661, %s963
    %v965 = vsel %vm83, %v938, 0
    %967 = vmatprep.subr.mxu0 0.0
    %968 = vmatpush1.msra.mxu0 %v261
    %969 = vmatprep.subr.mxu0 0.0
    %970 = vmatpush1.msra.mxu0 %v262
    %971 = vmatprep.subr.mxu0 0.0
    %972 = vmatpush1.msra.mxu0 0.0
    %973 = vmatprep.subr.mxu0 0.0
    %974 = vmatpush1.msra.mxu0 0.0
    %975 = vmatprep.subr.mxu0 0.0
    %976 = vmatpush1.msra.mxu0 0.0
    %977 = vmatprep.subr.mxu0 0.0
    %978 = vmatpush1.msra.mxu0 0.0
    %979 = vmatprep.subr.mxu0 0.0
    %980 = vmatpush1.msra.mxu0 0.0
    %981 = vmatprep.subr.mxu0 0.0
    %982 = vmatpush1.msra.mxu0 0.0
    %983 = vmatprep.subr.mxu0 0.0
    %984 = vmatpush1.msra.mxu0 0.0
    %985 = vmatprep.subr.mxu0 0.0
    %986 = vmatpush1.msra.mxu0 0.0
    %987 = vmatprep.subr.mxu0 0.0
    %988 = vmatpush1.msra.mxu0 0.0
    %989 = vmatprep.subr.mxu0 0.0
    %990 = vmatpush1.msra.mxu0 0.0
    %991 = vmatprep.subr.mxu0 0.0
    %992 = vmatpush1.msra.mxu0 0.0
    %993 = vmatprep.subr.mxu0 0.0
    %994 = vmatpush1.msra.mxu0 0.0
    %995 = vmatprep.subr.mxu0 0.0
    %996 = vmatpush1.msra.mxu0 0.0
    %997 = vmatprep.subr.mxu0 0.0
    %998 = vmatpush1.msra.mxu0 0.0
    %999 = vmatprep.subr.mxu0 0.0
    %1000 = vmatpush1.msra.mxu0 0.0
    %1001 = vmatprep.subr.mxu0 0.0
    %1002 = vmatpush1.msra.mxu0 0.0
    %1003 = vmatprep.subr.mxu0 0.0
    %1004 = vmatpush1.msra.mxu0 0.0
    %1005 = vmatprep.subr.mxu0 0.0
    %1006 = vmatpush1.msra.mxu0 0.0
    %1007 = vmatprep.subr.mxu0 0.0
    %1008 = vmatpush1.msra.mxu0 0.0
    %1009 = vmatprep.subr.mxu0 0.0
    %1010 = vmatpush1.msra.mxu0 0.0
    %1011 = vmatprep.subr.mxu0 0.0
    %1012 = vmatpush1.msra.mxu0 0.0
    %1013 = vmatprep.subr.mxu0 0.0
    %1014 = vmatpush1.msra.mxu0 0.0
    %1015 = vmatprep.subr.mxu0 0.0
    %1016 = vmatpush1.msra.mxu0 0.0
    %1017 = vmatprep.subr.mxu0 0.0
    %1018 = vmatpush1.msra.mxu0 0.0
    %1019 = vmatprep.subr.mxu0 0.0
    %1020 = vmatpush1.msra.mxu0 0.0
    %1021 = vmatprep.subr.mxu0 0.0
    %1022 = vmatpush1.msra.mxu0 0.0
    %1023 = vmatprep.subr.mxu0 0.0
    %1024 = vmatpush1.msra.mxu0 0.0
    %1025 = vmatprep.subr.mxu0 0.0
    %1026 = vmatpush1.msra.mxu0 0.0
    %1027 = vmatprep.subr.mxu0 0.0
    %1028 = vmatpush1.msra.mxu0 0.0
    %1029 = vmatprep.subr.mxu0 0.0
    %1030 = vmatpush1.msra.mxu0 0.0
    %1031 = vmatprep.mubr.f32.mxu0 0.0
    %1032 = vmatmul.mubr.f32.gmra.mrb[0].mxu0 %v965
    %v1033 = vpop.f32.mrb[0].mxu0
    %v1034 = vadd.f32 0.0, %v1033
    %v1035 = vpop.f32.mrb[0].mxu0
    %1036 = vdwg.mxu0
    %v1037 = vlaneseq
    %v1038 = vshrl.u32 %v1037, 7
    %v1039 = vsub.s32 0, %v1038
    %v1040 = vrot.slane %v1034, %v1039
    %v1041 = vadd.f32 %v329, %v1040
    %v1042 = vmax.f32 %v1041, 0.0
    %v1043 = vmul.f32 %v1042, %v429
    %v1044 = vsel %vm158, %v1043, 0.0
    %1045 = vadd.xlane.f32.xlu0 %v1044
    %v1046 = vpop.xlane.xlu0 %1045
    %v1047 = vrot.slane %v1046, 4
    %v1048 = vadd.f32 %v1046, %v1047
    %v1049 = vrot.slane %v1048, 2
    %v1050 = vadd.f32 %v1048, %v1049
    %v1051 = vrot.slane %v1050, 1
    %v1052 = vadd.f32 %v1050, %v1051
    %s1053 = vtos %v1052
    %v1054 = vrcp.pop 8.0
    %s1055 = vtos %v1054
    %s1056 = smul.f32 %s1053, %s1055
    %s1057 = sadd.f32 %s1056, %s260
    %s1058 = sxor.u32 %s1057, 2147483648
    %v1059 = vstv %s1058
    %v1060 = vmul.f32 %v1059, 1.442695
    %v1061 = vpow.pop %v1060
    %s1062 = vtos %v1061
    %s1063 = sadd.f32 %s1062, 1.0
    %v1064 = vstv %s1063
    %v1065 = vrcp.pop %v1064
    %s1066 = vtos %v1065
    %v1067 = vstv %s1066
    %v1068 = vmul.f32 %v1067, %v111
    %s1069 = ssub.f32 1.0, %s1066
    %v1070 = vstv %s1069
    %v1071 = vmul.f32 %v1070, %v117
    %v1072 = vadd.f32 %v1068, %v1071
    %v1073 = vmul.f32 %v1072, %v943
    %v1074 = vsel %vm83, %v1073, 0.0
    %1075 = vadd.xlane.f32.xlu0 %v1074
    %v1076 = vpop.xlane.xlu0 %1075
    %v1077 = vsub.f32 %v1076, %v113
    %v1078 = vmul.f32 %v1077, %v1077
    %v1079 = vsel %vm472, %v1078, 0.0
    %1080 = vadd.xlane.f32.xlu0 %v1079
    %v1081 = vpop.xlane.xlu0 %1080
    %v1082 = vrot.slane %v1081, 4
    %v1083 = vadd.f32 %v1081, %v1082
    %v1084 = vrot.slane %v1083, 2
    %v1085 = vadd.f32 %v1083, %v1084
    %v1086 = vrot.slane %v1085, 1
    %v1087 = vadd.f32 %v1085, %v1086
    %s1088 = vtos %v1087
    %v1089 = vrcp.pop 8.0
    %s1090 = vtos %v1089
    %s1091 = smul.f32 %s1088, %s1090
    %v1092 = vsub.f32 %v1076, %v119
    %v1093 = vmul.f32 %v1092, %v1092
    %v1094 = vsel %vm472, %v1093, 0.0
    %1095 = vadd.xlane.f32.xlu0 %v1094
    %v1096 = vpop.xlane.xlu0 %1095
    %v1097 = vrot.slane %v1096, 4
    %v1098 = vadd.f32 %v1096, %v1097
    %v1099 = vrot.slane %v1098, 2
    %v1100 = vadd.f32 %v1098, %v1099
    %v1101 = vrot.slane %v1100, 1
    %v1102 = vadd.f32 %v1100, %v1101
    %s1103 = vtos %v1102
    %v1104 = vrcp.pop 8.0
    %s1105 = vtos %v1104
    %s1106 = smul.f32 %s1103, %s1105
    %s1107 = smul.f32 %s1066, %s1091
    %s1108 = smul.f32 %s1069, %s1106
    %s1109 = sadd.f32 %s1107, %s1108
    %s1110 = scalar_lea.smem [#allocation9], 2
    %1111 = sst [smem:[%s1110]] %s1109
    %v1112 = vmul.f32 %v1067, %v1077
    %v1113 = vmul.f32 %v1070, %v1092
    %v1114 = vadd.f32 %v1112, %v1113
    %v1115 = vmul.f32 %v1114, 0.25
    %1117 = vset.pattern.permute.xlu0 0
    %1118 = vperm.xlu0 %1117, %v1115
    %v1119 = vpop.permute.xlu0 %1118
    %v1121 = vmul.f32 %v1119, %v1072
    %v1122 = vsel %vm83, %v1121, 0.0
    %v1123 = vrot.slane %v1122, 4
    %v1124 = vadd.f32 %v1122, %v1123
    %v1125 = vrot.slane %v1124, 2
    %v1126 = vadd.f32 %v1124, %v1125
    %v1127 = vrot.slane %v1126, 1
    %v1128 = vadd.f32 %v1126, %v1127
    %vm1129 = vcmp.gt.f32.partialorder %v1042, 0.0
    %v1130 = vsel %vm1129, 1, 0
    %v1131 = vcvt.s32.f32 %v1130
    %v1132 = vsel %vm158, %v1131, 0.0
    %v1133 = vrot.slane %v1132, 4
    %v1134 = vadd.f32 %v1132, %v1133
    %v1135 = vrot.slane %v1134, 2
    %v1136 = vadd.f32 %v1134, %v1135
    %v1137 = vrot.slane %v1136, 1
    %v1138 = vadd.f32 %v1136, %v1137
    %v1139 = vmul.f32 %v1138, %v259
    %v1141 = vsel %vm158, %v1139, 0
    %1143 = vmatprep.subr.mxu0 0.0
    %1144 = vmatpush1.msra.mxu0 %v263
    %1145 = vmatprep.subr.mxu0 0.0
    %1146 = vmatpush1.msra.mxu0 %v264
    %1147 = vmatprep.subr.mxu0 0.0
    %1148 = vmatpush1.msra.mxu0 %v265
    %1149 = vmatprep.subr.mxu0 0.0
    %1150 = vmatpush1.msra.mxu0 %v266
    %1151 = vmatprep.subr.mxu0 0.0
    %1152 = vmatpush1.msra.mxu0 0.0
    %1153 = vmatprep.subr.mxu0 0.0
    %1154 = vmatpush1.msra.mxu0 0.0
    %1155 = vmatprep.subr.mxu0 0.0
    %1156 = vmatpush1.msra.mxu0 0.0
    %1157 = vmatprep.subr.mxu0 0.0
    %1158 = vmatpush1.msra.mxu0 0.0
    %1159 = vmatprep.subr.mxu0 0.0
    %1160 = vmatpush1.msra.mxu0 0.0
    %1161 = vmatprep.subr.mxu0 0.0
    %1162 = vmatpush1.msra.mxu0 0.0
    %1163 = vmatprep.subr.mxu0 0.0
    %1164 = vmatpush1.msra.mxu0 0.0
    %1165 = vmatprep.subr.mxu0 0.0
    %1166 = vmatpush1.msra.mxu0 0.0
    %1167 = vmatprep.subr.mxu0 0.0
    %1168 = vmatpush1.msra.mxu0 0.0
    %1169 = vmatprep.subr.mxu0 0.0
    %1170 = vmatpush1.msra.mxu0 0.0
    %1171 = vmatprep.subr.mxu0 0.0
    %1172 = vmatpush1.msra.mxu0 0.0
    %1173 = vmatprep.subr.mxu0 0.0
    %1174 = vmatpush1.msra.mxu0 0.0
    %1175 = vmatprep.subr.mxu0 0.0
    %1176 = vmatpush1.msra.mxu0 0.0
    %1177 = vmatprep.subr.mxu0 0.0
    %1178 = vmatpush1.msra.mxu0 0.0
    %1179 = vmatprep.subr.mxu0 0.0
    %1180 = vmatpush1.msra.mxu0 0.0
    %1181 = vmatprep.subr.mxu0 0.0
    %1182 = vmatpush1.msra.mxu0 0.0
    %1183 = vmatprep.subr.mxu0 0.0
    %1184 = vmatpush1.msra.mxu0 0.0
    %1185 = vmatprep.subr.mxu0 0.0
    %1186 = vmatpush1.msra.mxu0 0.0
    %1187 = vmatprep.subr.mxu0 0.0
    %1188 = vmatpush1.msra.mxu0 0.0
    %1189 = vmatprep.subr.mxu0 0.0
    %1190 = vmatpush1.msra.mxu0 0.0
    %1191 = vmatprep.subr.mxu0 0.0
    %1192 = vmatpush1.msra.mxu0 0.0
    %1193 = vmatprep.subr.mxu0 0.0
    %1194 = vmatpush1.msra.mxu0 0.0
    %1195 = vmatprep.subr.mxu0 0.0
    %1196 = vmatpush1.msra.mxu0 0.0
    %1197 = vmatprep.subr.mxu0 0.0
    %1198 = vmatpush1.msra.mxu0 0.0
    %1199 = vmatprep.subr.mxu0 0.0
    %1200 = vmatpush1.msra.mxu0 0.0
    %1201 = vmatprep.subr.mxu0 0.0
    %1202 = vmatpush1.msra.mxu0 0.0
    %1203 = vmatprep.subr.mxu0 0.0
    %1204 = vmatpush1.msra.mxu0 0.0
    %1205 = vmatprep.subr.mxu0 0.0
    %1206 = vmatpush1.msra.mxu0 0.0
    %1207 = vmatprep.mubr.f32.mxu0 0.0
    %1208 = vmatmul.mubr.f32.gmra.mrb[0].mxu0 %v1141
    %v1209 = vpop.f32.mrb[0].mxu0
    %v1210 = vadd.f32 0.0, %v1209
    %v1211 = vpop.f32.mrb[0].mxu0
    %1212 = vdwg.mxu0
    %s1213 = smul.f32 %s1066, %s1069
    %v1214 = vrcp.pop 8.0
    %s1215 = vtos %v1214
    %s1216 = smul.f32 %s1213, %s1215
    %v1217 = vstv %s1216
    %v1218 = vmul.f32 %v1217, %v1210
    %v1219 = vsub.f32 %v111, %v117
    %v1220 = vmul.f32 %v1219, %v943
    %v1221 = vsel %vm83, %v1220, 0.0
    %1222 = vadd.xlane.f32.xlu0 %v1221
    %v1223 = vpop.xlane.xlu0 %1222
    %v1224 = vmul.f32 %v1115, %v1223
    %v1225 = vsel %vm472, %v1224, 0.0
    %1226 = vadd.xlane.f32.xlu0 %v1225
    %v1227 = vpop.xlane.xlu0 %1226
    %v1228 = vrot.slane %v1227, 4
    %v1229 = vadd.f32 %v1227, %v1228
    %v1230 = vrot.slane %v1229, 2
    %v1231 = vadd.f32 %v1229, %v1230
    %v1232 = vrot.slane %v1231, 1
    %v1233 = vadd.f32 %v1231, %v1232
    %s1234 = vtos %v1233
    %s1235 = ssub.f32 %s1091, %s1106
    %s1236 = sadd.f32 %s1234, %s1235
    %v1237 = vstv %s1236
    %v1238 = vmul.f32 %v1237, %v1218
    %v1239 = vadd.f32 %v1128, %v1238
    %v1240 = vmul.f32 %v1239, 0.001
    %v1241 = vsub.f32 %v938, %v1240
    %v1243 = vlaneseq
    %v1244 = vshrl.u32 %v1243, 7
    %v1245 = vsub.s32 0, %v1244
    %v1246 = vrot.slane %v1241, %v1245
    %v1248 = vmul.f32 %v123, %v1246
    %v1249 = vsel %vm83, %v1248, 0.0
    %1250 = vadd.xlane.f32.xlu0 %v1249
    %v1251 = vpop.xlane.xlu0 %1250
    %v1252 = vsub.f32 %v1251, %v125
    %v1253 = vmul.f32 %v1252, %v1252
    %v1254 = vsel %vm472, %v1253, 0.0
    %1255 = vadd.xlane.f32.xlu0 %v1254
    %v1256 = vpop.xlane.xlu0 %1255
    %v1257 = vrot.slane %v1256, 4
    %v1258 = vadd.f32 %v1256, %v1257
    %v1259 = vrot.slane %v1258, 2
    %v1260 = vadd.f32 %v1258, %v1259
    %v1261 = vrot.slane %v1260, 1
    %v1262 = vadd.f32 %v1260, %v1261
    %s1263 = vtos %v1262
    %v1264 = vrcp.pop 8.0
    %s1265 = vtos %v1264
    %s1266 = smul.f32 %s1263, %s1265
    %s1267 = sadd.f32 %s964, %s1266
    %v1268 = vsel %vm83, %v1241, 0
    %1270 = vmatprep.subr.mxu0 0.0
    %1271 = vmatpush1.msra.mxu0 %v261
    %1272 = vmatprep.subr.mxu0 0.0
    %1273 = vmatpush1.msra.mxu0 %v262
    %1274 = vmatprep.subr.mxu0 0.0
    %1275 = vmatpush1.msra.mxu0 0.0
    %1276 = vmatprep.subr.mxu0 0.0
    %1277 = vmatpush1.msra.mxu0 0.0
    %1278 = vmatprep.subr.mxu0 0.0
    %1279 = vmatpush1.msra.mxu0 0.0
    %1280 = vmatprep.subr.mxu0 0.0
    %1281 = vmatpush1.msra.mxu0 0.0
    %1282 = vmatprep.subr.mxu0 0.0
    %1283 = vmatpush1.msra.mxu0 0.0
    %1284 = vmatprep.subr.mxu0 0.0
    %1285 = vmatpush1.msra.mxu0 0.0
    %1286 = vmatprep.subr.mxu0 0.0
    %1287 = vmatpush1.msra.mxu0 0.0
    %1288 = vmatprep.subr.mxu0 0.0
    %1289 = vmatpush1.msra.mxu0 0.0
    %1290 = vmatprep.subr.mxu0 0.0
    %1291 = vmatpush1.msra.mxu0 0.0
    %1292 = vmatprep.subr.mxu0 0.0
    %1293 = vmatpush1.msra.mxu0 0.0
    %1294 = vmatprep.subr.mxu0 0.0
    %1295 = vmatpush1.msra.mxu0 0.0
    %1296 = vmatprep.subr.mxu0 0.0
    %1297 = vmatpush1.msra.mxu0 0.0
    %1298 = vmatprep.subr.mxu0 0.0
    %1299 = vmatpush1.msra.mxu0 0.0
    %1300 = vmatprep.subr.mxu0 0.0
    %1301 = vmatpush1.msra.mxu0 0.0
    %1302 = vmatprep.subr.mxu0 0.0
    %1303 = vmatpush1.msra.mxu0 0.0
    %1304 = vmatprep.subr.mxu0 0.0
    %1305 = vmatpush1.msra.mxu0 0.0
    %1306 = vmatprep.subr.mxu0 0.0
    %1307 = vmatpush1.msra.mxu0 0.0
    %1308 = vmatprep.subr.mxu0 0.0
    %1309 = vmatpush1.msra.mxu0 0.0
    %1310 = vmatprep.subr.mxu0 0.0
    %1311 = vmatpush1.msra.mxu0 0.0
    %1312 = vmatprep.subr.mxu0 0.0
    %1313 = vmatpush1.msra.mxu0 0.0
    %1314 = vmatprep.subr.mxu0 0.0
    %1315 = vmatpush1.msra.mxu0 0.0
    %1316 = vmatprep.subr.mxu0 0.0
    %1317 = vmatpush1.msra.mxu0 0.0
    %1318 = vmatprep.subr.mxu0 0.0
    %1319 = vmatpush1.msra.mxu0 0.0
    %1320 = vmatprep.subr.mxu0 0.0
    %1321 = vmatpush1.msra.mxu0 0.0
    %1322 = vmatprep.subr.mxu0 0.0
    %1323 = vmatpush1.msra.mxu0 0.0
    %1324 = vmatprep.subr.mxu0 0.0
    %1325 = vmatpush1.msra.mxu0 0.0
    %1326 = vmatprep.subr.mxu0 0.0
    %1327 = vmatpush1.msra.mxu0 0.0
    %1328 = vmatprep.subr.mxu0 0.0
    %1329 = vmatpush1.msra.mxu0 0.0
    %1330 = vmatprep.subr.mxu0 0.0
    %1331 = vmatpush1.msra.mxu0 0.0
    %1332 = vmatprep.subr.mxu0 0.0
    %1333 = vmatpush1.msra.mxu0 0.0
    %1334 = vmatprep.mubr.f32.mxu0 0.0
    %1335 = vmatmul.mubr.f32.gmra.mrb[0].mxu0 %v1268
    %v1336 = vpop.f32.mrb[0].mxu0
    %v1337 = vadd.f32 0.0, %v1336
    %v1338 = vpop.f32.mrb[0].mxu0
    %1339 = vdwg.mxu0
    %v1340 = vlaneseq
    %v1341 = vshrl.u32 %v1340, 7
    %v1342 = vsub.s32 0, %v1341
    %v1343 = vrot.slane %v1337, %v1342
    %v1344 = vadd.f32 %v344, %v1343
    %v1345 = vmax.f32 %v1344, 0.0
    %v1346 = vmul.f32 %v1345, %v429
    %v1347 = vsel %vm158, %v1346, 0.0
    %1348 = vadd.xlane.f32.xlu0 %v1347
    %v1349 = vpop.xlane.xlu0 %1348
    %v1350 = vrot.slane %v1349, 4
    %v1351 = vadd.f32 %v1349, %v1350
    %v1352 = vrot.slane %v1351, 2
    %v1353 = vadd.f32 %v1351, %v1352
    %v1354 = vrot.slane %v1353, 1
    %v1355 = vadd.f32 %v1353, %v1354
    %s1356 = vtos %v1355
    %v1357 = vrcp.pop 8.0
    %s1358 = vtos %v1357
    %s1359 = smul.f32 %s1356, %s1358
    %s1360 = sadd.f32 %s1359, %s260
    %s1361 = sxor.u32 %s1360, 2147483648
    %v1362 = vstv %s1361
    %v1363 = vmul.f32 %v1362, 1.442695
    %v1364 = vpow.pop %v1363
    %s1365 = vtos %v1364
    %s1366 = sadd.f32 %s1365, 1.0
    %v1367 = vstv %s1366
    %v1368 = vrcp.pop %v1367
    %s1369 = vtos %v1368
    %v1370 = vstv %s1369
    %v1371 = vmul.f32 %v1370, %v134
    %s1372 = ssub.f32 1.0, %s1369
    %v1373 = vstv %s1372
    %v1374 = vmul.f32 %v1373, %v140
    %v1375 = vadd.f32 %v1371, %v1374
    %v1376 = vmul.f32 %v1375, %v1246
    %v1377 = vsel %vm83, %v1376, 0.0
    %1378 = vadd.xlane.f32.xlu0 %v1377
    %v1379 = vpop.xlane.xlu0 %1378
    %v1380 = vsub.f32 %v1379, %v136
    %v1381 = vmul.f32 %v1380, %v1380
    %v1382 = vsel %vm472, %v1381, 0.0
    %1383 = vadd.xlane.f32.xlu0 %v1382
    %v1384 = vpop.xlane.xlu0 %1383
    %v1385 = vrot.slane %v1384, 4
    %v1386 = vadd.f32 %v1384, %v1385
    %v1387 = vrot.slane %v1386, 2
    %v1388 = vadd.f32 %v1386, %v1387
    %v1389 = vrot.slane %v1388, 1
    %v1390 = vadd.f32 %v1388, %v1389
    %s1391 = vtos %v1390
    %v1392 = vrcp.pop 8.0
    %s1393 = vtos %v1392
    %s1394 = smul.f32 %s1391, %s1393
    %v1395 = vsub.f32 %v1379, %v142
    %v1396 = vmul.f32 %v1395, %v1395
    %v1397 = vsel %vm472, %v1396, 0.0
    %1398 = vadd.xlane.f32.xlu0 %v1397
    %v1399 = vpop.xlane.xlu0 %1398
    %v1400 = vrot.slane %v1399, 4
    %v1401 = vadd.f32 %v1399, %v1400
    %v1402 = vrot.slane %v1401, 2
    %v1403 = vadd.f32 %v1401, %v1402
    %v1404 = vrot.slane %v1403, 1
    %v1405 = vadd.f32 %v1403, %v1404
    %s1406 = vtos %v1405
    %v1407 = vrcp.pop 8.0
    %s1408 = vtos %v1407
    %s1409 = smul.f32 %s1406, %s1408
    %s1410 = smul.f32 %s1369, %s1394
    %s1411 = smul.f32 %s1372, %s1409
    %s1412 = sadd.f32 %s1410, %s1411
    %s1413 = scalar_lea.smem [#allocation9], 3
    %1414 = sst [smem:[%s1413]] %s1412
    %v1415 = vmul.f32 %v1370, %v1380
    %v1416 = vmul.f32 %v1373, %v1395
    %v1417 = vadd.f32 %v1415, %v1416
    %v1418 = vmul.f32 %v1417, 0.25
    %1420 = vset.pattern.permute.xlu0 0
    %1421 = vperm.xlu0 %1420, %v1418
    %v1422 = vpop.permute.xlu0 %1421
    %v1424 = vmul.f32 %v1422, %v1375
    %v1425 = vsel %vm83, %v1424, 0.0
    %v1426 = vrot.slane %v1425, 4
    %v1427 = vadd.f32 %v1425, %v1426
    %v1428 = vrot.slane %v1427, 2
    %v1429 = vadd.f32 %v1427, %v1428
    %v1430 = vrot.slane %v1429, 1
    %v1431 = vadd.f32 %v1429, %v1430
    %vm1432 = vcmp.gt.f32.partialorder %v1345, 0.0
    %v1433 = vsel %vm1432, 1, 0
    %v1434 = vcvt.s32.f32 %v1433
    %v1435 = vsel %vm158, %v1434, 0.0
    %v1436 = vrot.slane %v1435, 4
    %v1437 = vadd.f32 %v1435, %v1436
    %v1438 = vrot.slane %v1437, 2
    %v1439 = vadd.f32 %v1437, %v1438
    %v1440 = vrot.slane %v1439, 1
    %v1441 = vadd.f32 %v1439, %v1440
    %v1442 = vmul.f32 %v1441, %v259
    %v1444 = vsel %vm158, %v1442, 0
    %1446 = vmatprep.subr.mxu0 0.0
    %1447 = vmatpush1.msra.mxu0 %v263
    %1448 = vmatprep.subr.mxu0 0.0
    %1449 = vmatpush1.msra.mxu0 %v264
    %1450 = vmatprep.subr.mxu0 0.0
    %1451 = vmatpush1.msra.mxu0 %v265
    %1452 = vmatprep.subr.mxu0 0.0
    %1453 = vmatpush1.msra.mxu0 %v266
    %1454 = vmatprep.subr.mxu0 0.0
    %1455 = vmatpush1.msra.mxu0 0.0
    %1456 = vmatprep.subr.mxu0 0.0
    %1457 = vmatpush1.msra.mxu0 0.0
    %1458 = vmatprep.subr.mxu0 0.0
    %1459 = vmatpush1.msra.mxu0 0.0
    %1460 = vmatprep.subr.mxu0 0.0
    %1461 = vmatpush1.msra.mxu0 0.0
    %1462 = vmatprep.subr.mxu0 0.0
    %1463 = vmatpush1.msra.mxu0 0.0
    %1464 = vmatprep.subr.mxu0 0.0
    %1465 = vmatpush1.msra.mxu0 0.0
    %1466 = vmatprep.subr.mxu0 0.0
    %1467 = vmatpush1.msra.mxu0 0.0
    %1468 = vmatprep.subr.mxu0 0.0
    %1469 = vmatpush1.msra.mxu0 0.0
    %1470 = vmatprep.subr.mxu0 0.0
    %1471 = vmatpush1.msra.mxu0 0.0
    %1472 = vmatprep.subr.mxu0 0.0
    %1473 = vmatpush1.msra.mxu0 0.0
    %1474 = vmatprep.subr.mxu0 0.0
    %1475 = vmatpush1.msra.mxu0 0.0
    %1476 = vmatprep.subr.mxu0 0.0
    %1477 = vmatpush1.msra.mxu0 0.0
    %1478 = vmatprep.subr.mxu0 0.0
    %1479 = vmatpush1.msra.mxu0 0.0
    %1480 = vmatprep.subr.mxu0 0.0
    %1481 = vmatpush1.msra.mxu0 0.0
    %1482 = vmatprep.subr.mxu0 0.0
    %1483 = vmatpush1.msra.mxu0 0.0
    %1484 = vmatprep.subr.mxu0 0.0
    %1485 = vmatpush1.msra.mxu0 0.0
    %1486 = vmatprep.subr.mxu0 0.0
    %1487 = vmatpush1.msra.mxu0 0.0
    %1488 = vmatprep.subr.mxu0 0.0
    %1489 = vmatpush1.msra.mxu0 0.0
    %1490 = vmatprep.subr.mxu0 0.0
    %1491 = vmatpush1.msra.mxu0 0.0
    %1492 = vmatprep.subr.mxu0 0.0
    %1493 = vmatpush1.msra.mxu0 0.0
    %1494 = vmatprep.subr.mxu0 0.0
    %1495 = vmatpush1.msra.mxu0 0.0
    %1496 = vmatprep.subr.mxu0 0.0
    %1497 = vmatpush1.msra.mxu0 0.0
    %1498 = vmatprep.subr.mxu0 0.0
    %1499 = vmatpush1.msra.mxu0 0.0
    %1500 = vmatprep.subr.mxu0 0.0
    %1501 = vmatpush1.msra.mxu0 0.0
    %1502 = vmatprep.subr.mxu0 0.0
    %1503 = vmatpush1.msra.mxu0 0.0
    %1504 = vmatprep.subr.mxu0 0.0
    %1505 = vmatpush1.msra.mxu0 0.0
    %1506 = vmatprep.subr.mxu0 0.0
    %1507 = vmatpush1.msra.mxu0 0.0
    %1508 = vmatprep.subr.mxu0 0.0
    %1509 = vmatpush1.msra.mxu0 0.0
    %1510 = vmatprep.mubr.f32.mxu0 0.0
    %1511 = vmatmul.mubr.f32.gmra.mrb[0].mxu0 %v1444
    %v1512 = vpop.f32.mrb[0].mxu0
    %v1513 = vadd.f32 0.0, %v1512
    %v1514 = vpop.f32.mrb[0].mxu0
    %1515 = vdwg.mxu0
    %s1516 = smul.f32 %s1369, %s1372
    %v1517 = vrcp.pop 8.0
    %s1518 = vtos %v1517
    %s1519 = smul.f32 %s1516, %s1518
    %v1520 = vstv %s1519
    %v1521 = vmul.f32 %v1520, %v1513
    %v1522 = vsub.f32 %v134, %v140
    %v1523 = vmul.f32 %v1522, %v1246
    %v1524 = vsel %vm83, %v1523, 0.0
    %1525 = vadd.xlane.f32.xlu0 %v1524
    %v1526 = vpop.xlane.xlu0 %1525
    %v1527 = vmul.f32 %v1418, %v1526
    %v1528 = vsel %vm472, %v1527, 0.0
    %1529 = vadd.xlane.f32.xlu0 %v1528
    %v1530 = vpop.xlane.xlu0 %1529
    %v1531 = vrot.slane %v1530, 4
    %v1532 = vadd.f32 %v1530, %v1531
    %v1533 = vrot.slane %v1532, 2
    %v1534 = vadd.f32 %v1532, %v1533
    %v1535 = vrot.slane %v1534, 1
    %v1536 = vadd.f32 %v1534, %v1535
    %s1537 = vtos %v1536
    %s1538 = ssub.f32 %s1394, %s1409
    %s1539 = sadd.f32 %s1537, %s1538
    %v1540 = vstv %s1539
    %v1541 = vmul.f32 %v1540, %v1521
    %v1542 = vadd.f32 %v1431, %v1541
    %v1543 = vmul.f32 %v1542, 0.001
    %v1544 = vsub.f32 %v1241, %v1543
    %v1546 = vlaneseq
    %v1547 = vshrl.u32 %v1546, 7
    %v1548 = vsub.s32 0, %v1547
    %v1549 = vrot.slane %v1544, %v1548
    %v1551 = vmul.f32 %v146, %v1549
    %v1552 = vsel %vm83, %v1551, 0.0
    %1553 = vadd.xlane.f32.xlu0 %v1552
    %v1554 = vpop.xlane.xlu0 %1553
    %v1555 = vsub.f32 %v1554, %v148
    %v1556 = vmul.f32 %v1555, %v1555
    %v1557 = vsel %vm472, %v1556, 0.0
    %1558 = vadd.xlane.f32.xlu0 %v1557
    %v1559 = vpop.xlane.xlu0 %1558
    %v1560 = vrot.slane %v1559, 4
    %v1561 = vadd.f32 %v1559, %v1560
    %v1562 = vrot.slane %v1561, 2
    %v1563 = vadd.f32 %v1561, %v1562
    %v1564 = vrot.slane %v1563, 1
    %v1565 = vadd.f32 %v1563, %v1564
    %s1566 = vtos %v1565
    %v1567 = vrcp.pop 8.0
    %s1568 = vtos %v1567
    %s1569 = smul.f32 %s1566, %s1568
    %s1570 = sadd.f32 %s1267, %s1569
    %vm1571 = vcmask 122880
    %1572 = vst.msk [vmem:[#allocation7] sm:$0x1] %vm1571, %v1544
    %s1573 = scalar_lea.smem [#allocation8], 0
    %1574 = sst [smem:[%s1573]] %s1570
    // Predicated region
    $region54: #{unrolled_blackbox_optimizer.1} parent=1 // pred_check
      _
    $region55: #{unrolled_blackbox_optimizer.1} parent=1 // pred_check_branch
      %1576 = sbr.rel (0) target = $region57
    $region56: #{unrolled_blackbox_optimizer.1} parent=1 // pred_region
      %s1578 = ssub.s32 16, 16
      %1579 = vsyncadd [#allocation4], %s1578
      %s1581 = sshll.u32 [#allocation7], 4
      %s1582 = int_to_ptr.vmem [resolvable:$true] %s1581
      %1584 = dma.vmem_to_hbm [thread:$0]  %s1582, 16, %s12, [#allocation4]
    $region57: #{unrolled_blackbox_optimizer.1} parent=1 // pred_fallthru
      _
    // Predicated region
    $region58: #{unrolled_blackbox_optimizer.1} parent=1 // pred_check
      _
    $region59: #{unrolled_blackbox_optimizer.1} parent=1 // pred_check_branch
      %1586 = sbr.rel (0) target = $region61
    $region60: #{unrolled_blackbox_optimizer.1} parent=1 // pred_region
      %s1588 = ssub.s32 16, 16
      %1589 = vsyncadd [#allocation5], %s1588
      %1592 = dma.smem_to_hbm [#allocation8], 16, %s13, [#allocation5]
    $region61: #{unrolled_blackbox_optimizer.1} parent=1 // pred_fallthru
      _
    // Predicated region
    $region62: #{unrolled_blackbox_optimizer.1} parent=1 // pred_check
      _
    $region63: #{unrolled_blackbox_optimizer.1} parent=1 // pred_check_branch
      %1594 = sbr.rel (0) target = $region65
    $region64: #{unrolled_blackbox_optimizer.1} parent=1 // pred_region
      %s1596 = ssub.s32 16, 16
      %1597 = vsyncadd [#allocation10], %s1596
      %1600 = dma.smem_to_hbm [#allocation9], 16, %s14, [#allocation10]
    $region65: #{unrolled_blackbox_optimizer.1} parent=1 // pred_fallthru
      _
    // Predicated region
    $region66: #{unrolled_blackbox_optimizer.1} parent=1 // pred_check
      _
    $region67: #{unrolled_blackbox_optimizer.1} parent=1 // pred_check_branch
      %1602 = sbr.rel (0) target = $region69
    $region68: #{unrolled_blackbox_optimizer.1} parent=1 // pred_region
      %1603 = dma.done [#allocation4], 16
    $region69: #{unrolled_blackbox_optimizer.1} parent=1 // pred_fallthru
      _
    // Predicated region
    $region70: #{unrolled_blackbox_optimizer.1} parent=1 // pred_check
      _
    $region71: #{unrolled_blackbox_optimizer.1} parent=1 // pred_check_branch
      %1605 = sbr.rel (0) target = $region73
    $region72: #{unrolled_blackbox_optimizer.1} parent=1 // pred_region
      %1606 = dma.done [#allocation5], 16
    $region73: #{unrolled_blackbox_optimizer.1} parent=1 // pred_fallthru
      _
    // Predicated region
    $region74: #{unrolled_blackbox_optimizer.1} parent=1 // pred_check
      _
    $region75: #{unrolled_blackbox_optimizer.1} parent=1 // pred_check_branch
      %1608 = sbr.rel (0) target = $region77
    $region76: #{unrolled_blackbox_optimizer.1} parent=1 // pred_region
      %1609 = dma.done [#allocation10], 16
    $region77: #{unrolled_blackbox_optimizer.1} parent=1 // pred_fallthru
      _
    %1610 = sfence
    %1611 = vsyncpa [#allocation4], 1
    %1612 = vsyncpa [#allocation5], 1
    %1613 = vsyncpa [#allocation10], 1
    %1614 = vsyncpa [#allocation6], 1

</llo_original>
